<compile_context>
chip_gen: v5e
topology: v5e:2x2
jax: 0.10.0
libtpu: 0.0.40
codegen_flags: <defaults>
</compile_context>

<pallas_src>
import numpy as np
import jax
import jax.numpy as jnp
from jax import lax
from jax.experimental import pallas as pl
from jax.experimental.pallas import tpu as pltpu

C1P = 8      # conv1 channel group stride in lanes (6 real channels, padded to 8)
C2P = 16     # conv2 channel group stride in lanes (12 real channels, padded to 16)
OUTP = 128   # final logits padded 10 -> 128 lanes (lane-dense, unmasked store)


# ----------------------------------------------------------------------------
# Single fused kernel.
#   x_ref   : (2, 14, Bblk, 28)   rows parity-split: [par, r2, b, col] = image
#                                 row 2*r2+par of sample b.
#   w1_ref  : (2, 5, 28, 96)      conv1 banded weights [dw, kh, col, pw1*8+c]
#   w2_ref  : (2, 5, 96, 64)      conv2 banded weights [dw2, kh2, pw1*8+ci,
#                                                       pw2*16+co]
#   wfc1    : (256, 120)          fc1, input lanes ordered (ph2, pw2, co)
#   o_ref   : (Bblk, 128)         lane-dense logits (first 10 lanes valid)
# ----------------------------------------------------------------------------
def lenet_kernel(x_ref, w1_ref, b1_ref, w2_ref, b2_ref,
                 wfc1_ref, bfc1_ref, wfc2_ref, bfc2_ref,
                 wout_ref, bout_ref, o_ref):
    f32 = jnp.float32
    xv = x_ref[...]                               # (2, 14, Bblk, 28)
    bb = xv.shape[2]

    # ---- conv1 + ReLU + pool1 -----------------------------------------------
    # Slab j = dh + kh holds image rows 2*ph + j (ph major, batch sublane).
    slabs = [xv[j % 2, j // 2: j // 2 + 12].reshape(12 * bb, 28)
             for j in range(6)]
    w1v = w1_ref[...]                             # (2, 5, 28, 96)

    def conv1_quarter(dh, dw):
        p = [jnp.dot(slabs[dh + kh], w1v[dw, kh], preferred_element_type=f32)
             for kh in range(5)]
        return ((p[0] + p[1]) + (p[2] + p[3])) + p[4]     # (12*Bblk, 96)

    # 2x2 pool = max over the 4 (dh, dw) pool offsets (bias/ReLU commute).
    f1 = jnp.maximum(jnp.maximum(conv1_quarter(0, 0), conv1_quarter(0, 1)),
                     jnp.maximum(conv1_quarter(1, 0), conv1_quarter(1, 1)))
    f1 = jnp.maximum(f1 + b1_ref[...], 0.0)               # (12*Bblk, 96)
    f1 = f1.reshape(12, bb, 96)                           # rows = pooled ph

    # ---- conv2 + ReLU + pool2 -----------------------------------------------
    w2v = w2_ref[...]                             # (2, 5, 96, 64)

    def conv2_half(dw2):
        p = [jnp.dot(f1[kh2: kh2 + 8].reshape(8 * bb, 96), w2v[dw2, kh2],
                     preferred_element_type=f32)
             for kh2 in range(5)]
        return ((p[0] + p[1]) + (p[2] + p[3])) + p[4]     # (8*Bblk, 64)

    m = jnp.maximum(conv2_half(0), conv2_half(1))         # pool over dw2
    m = jnp.maximum(m + b2_ref[...], 0.0)                 # bias + ReLU
    mr = m.reshape(4, 2, bb, 64)                          # (ph2, dh2, b, lanes)
    f2 = jnp.maximum(mr[:, 0], mr[:, 1])                  # pool over dh2

    # ---- flatten + fc1/fc2/out ----------------------------------------------
    # Lane concat of the 4 pooled rows -> single K=256 fc1 contraction.
    v = jnp.concatenate([f2[0], f2[1], f2[2], f2[3]], axis=-1)   # (Bblk, 256)
    h = jnp.maximum(jnp.dot(v, wfc1_ref[...], preferred_element_type=f32)
                    + bfc1_ref[...], 0.0)                        # (Bblk, 120)
    h = jnp.maximum(jnp.dot(h, wfc2_ref[...], preferred_element_type=f32)
                    + bfc2_ref[...], 0.0)                        # (Bblk, 60)
    o_ref[...] = (jnp.dot(h, wout_ref[...], preferred_element_type=f32)
                  + bout_ref[...])                               # (Bblk, 128)


def _pick_block_b(batch):
    # Bigger tiles amortize per-step overhead; >=2 grid steps when batch >= 16
    # (2 TCs on v7x).  All choices stay far under the 16 MiB scoped VMEM floor.
    if batch >= 128:
        return 64
    if batch >= 64:
        return 32
    if batch >= 32:
        return 16
    return 8


def network_forward(params, x_nchw):
    """x_nchw: (B, 1, 28, 28) float32 -> (B, 10) logits."""
    b = x_nchw.shape[0]
    block_b = _pick_block_b(b)
    bp = ((b + block_b - 1) // block_b) * block_b
    x = x_nchw.reshape(b, 28, 28).astype(jnp.float32)
    if bp != b:
        x = jnp.pad(x, ((0, bp - b), (0, 0), (0, 0)))

    # Cheap XLA prep (no patch expansion): row-parity split + (row, batch)
    # transpose so every in-kernel slab slice is a contiguous major-dim slice.
    # TODO(synk): this last bit of prep could also move in-kernel via strided
    # major-dim slices; kept in XLA for lowering safety.
    xprep = jnp.stack([x[:, 0::2, :], x[:, 1::2, :]], axis=0)   # (2, bp, 14, 28)
    xprep = jnp.transpose(xprep, (0, 2, 1, 3))                  # (2, 14, bp, 28)

    grid = (bp // block_b,)
    out = pl.pallas_call(
        lenet_kernel,
        out_shape=jax.ShapeDtypeStruct((bp, OUTP), jnp.float32),
        grid=grid,
        in_specs=[
            pl.BlockSpec((2, 14, block_b, 28), lambda i: (0, 0, i, 0)),
            pl.BlockSpec((2, 5, 28, 96), lambda i: (0, 0, 0, 0)),
            pl.BlockSpec((1, 96), lambda i: (0, 0)),
            pl.BlockSpec((2, 5, 96, 64), lambda i: (0, 0, 0, 0)),
            pl.BlockSpec((1, 64), lambda i: (0, 0)),
            pl.BlockSpec((256, 120), lambda i: (0, 0)),
            pl.BlockSpec((1, 120), lambda i: (0, 0)),
            pl.BlockSpec((120, 60), lambda i: (0, 0)),
            pl.BlockSpec((1, 60), lambda i: (0, 0)),
            pl.BlockSpec((60, OUTP), lambda i: (0, 0)),
            pl.BlockSpec((1, OUTP), lambda i: (0, 0)),
        ],
        out_specs=pl.BlockSpec((block_b, OUTP), lambda i: (i, 0)),
        compiler_params=pltpu.CompilerParams(
            dimension_semantics=("parallel",)),
    )(xprep, params["w1b"], params["b1t"], params["w2b"], params["b2t"],
      params["wfc1"], params["bfc1"], params["wfc2"], params["bfc2"],
      params["wout"], params["bout"])
    return out[:b, :10]


# ----------------------------------------------------------------------------
# Parameter init (PyTorch-style) and banded-weight layout prep (host side).
# ----------------------------------------------------------------------------
def init_torch_params(key):
    ks = jax.random.split(key, 10)

    def u(k, shape, fan_in):
        bound = 1.0 / np.sqrt(fan_in)
        return jax.random.uniform(k, shape, jnp.float32, -bound, bound)

    return dict(
        conv1_w=u(ks[0], (6, 1, 5, 5), 25), conv1_b=u(ks[1], (6,), 25),
        conv2_w=u(ks[2], (12, 6, 5, 5), 150), conv2_b=u(ks[3], (12,), 150),
        fc1_w=u(ks[4], (120, 192), 192), fc1_b=u(ks[5], (120,), 192),
        fc2_w=u(ks[6], (60, 120), 120), fc2_b=u(ks[7], (60,), 120),
        out_w=u(ks[8], (10, 60), 60), out_b=u(ks[9], (10,), 60))


def prepare_kernel_params(tp):
    w1 = np.asarray(tp["conv1_w"]); b1 = np.asarray(tp["conv1_b"])
    w2 = np.asarray(tp["conv2_w"]); b2 = np.asarray(tp["conv2_b"])
    fc1w = np.asarray(tp["fc1_w"]); fc1b = np.asarray(tp["fc1_b"])
    fc2w = np.asarray(tp["fc2_w"]); fc2b = np.asarray(tp["fc2_b"])
    outw = np.asarray(tp["out_w"]); outb = np.asarray(tp["out_b"])

    # conv1 banded weights: [dw, kh, image col, pw1*8 + c].
    w1b = np.zeros((2, 5, 28, 12 * C1P), np.float32)
    for dw in range(2):
        for kh in range(5):
            for pw1 in range(12):
                for kw in range(5):
                    col = 2 * pw1 + dw + kw
                    w1b[dw, kh, col, pw1 * C1P: pw1 * C1P + 6] = w1[:, 0, kh, kw]
    b1t = np.zeros((1, 12 * C1P), np.float32)
    for pw1 in range(12):
        b1t[0, pw1 * C1P: pw1 * C1P + 6] = b1

    # conv2 banded weights: [dw2, kh2, pw1*8 + ci, pw2*16 + co].
    w2b = np.zeros((2, 5, 12 * C1P, 4 * C2P), np.float32)
    for dw2 in range(2):
        for kh2 in range(5):
            for pw2 in range(4):
                for kw2 in range(5):
                    pw1 = 2 * pw2 + dw2 + kw2
                    w2b[dw2, kh2,
                        pw1 * C1P: pw1 * C1P + 6,
                        pw2 * C2P: pw2 * C2P + 12] = w2[:, :, kh2, kw2].T
    b2t = np.zeros((1, 4 * C2P), np.float32)
    for pw2 in range(4):
        b2t[0, pw2 * C2P: pw2 * C2P + 12] = b2

    # fc1: kernel K index = ph2*64 + pw2*16 + co  <->  PyTorch flat index
    # c*16 + ph2*4 + pw2, so no in-kernel transpose of the flatten is needed.
    wfc1 = np.zeros((4 * 4 * C2P, 120), np.float32)
    for ph2 in range(4):
        for pw2 in range(4):
            for co in range(12):
                wfc1[ph2 * 64 + pw2 * 16 + co, :] = \
                    fc1w[:, co * 16 + ph2 * 4 + pw2]
    bfc1 = fc1b.reshape(1, 120).astype(np.float32)

    wfc2 = np.ascontiguousarray(fc2w.T).astype(np.float32)
    bfc2 = fc2b.reshape(1, 60).astype(np.float32)

    wout = np.zeros((60, OUTP), np.float32)
    wout[:, :10] = outw.T
    bout = np.zeros((1, OUTP), np.float32)
    bout[0, :10] = outb

    host = dict(w1b=w1b, b1t=b1t, w2b=w2b, b2t=b2t, wfc1=wfc1, bfc1=bfc1,
                wfc2=wfc2, bfc2=bfc2, wout=wout, bout=bout)
    return {k: jnp.asarray(v) for k, v in host.items()}


# ----------------------------------------------------------------------------
# Pure-JAX reference (mirrors the PyTorch forward) for a correctness check.
# ----------------------------------------------------------------------------
def reference_forward(tp, x):
    dn = ("NCHW", "OIHW", "NCHW")
    t = lax.conv_general_dilated(x, tp["conv1_w"], (1, 1), "VALID",
                                 dimension_numbers=dn,
                                 precision=lax.Precision.HIGHEST)
    t = jnp.maximum(t + tp["conv1_b"].reshape(1, 6, 1, 1), 0.0)
    t = lax.reduce_window(t, -jnp.inf, lax.max, (1, 1, 2, 2), (1, 1, 2, 2),
                          "VALID")
    t = lax.conv_general_dilated(t, tp["conv2_w"], (1, 1), "VALID",
                                 dimension_numbers=dn,
                                 precision=lax.Precision.HIGHEST)
    t = jnp.maximum(t + tp["conv2_b"].reshape(1, 12, 1, 1), 0.0)
    t = lax.reduce_window(t, -jnp.inf, lax.max, (1, 1, 2, 2), (1, 1, 2, 2),
                          "VALID")
    t = t.reshape(-1, 12 * 4 * 4)
    t = jnp.maximum(jnp.dot(t, tp["fc1_w"].T, precision=lax.Precision.HIGHEST)
                    + tp["fc1_b"], 0.0)
    t = jnp.maximum(jnp.dot(t, tp["fc2_w"].T, precision=lax.Precision.HIGHEST)
                    + tp["fc2_b"], 0.0)
    return jnp.dot(t, tp["out_w"].T, precision=lax.Precision.HIGHEST) \
        + tp["out_b"]


if __name__ == "__main__":
    key = jax.random.PRNGKey(0)
    pkey, xkey = jax.random.split(key)
    torch_params = init_torch_params(pkey)
    params = prepare_kernel_params(torch_params)

    # Input consistent with the module: 28x28 single-channel images, batch=2.
    x = jax.random.normal(xkey, (2, 1, 28, 28), jnp.float32)

    out = jax.jit(network_forward)(params, x)
    out = jax.block_until_ready(out)
    assert out.shape == (2, 10)

    ref = reference_forward(torch_params, x)
    err = float(jnp.max(jnp.abs(out - ref)))
    assert err < 2e-2, f"mismatch vs reference: max abs err = {err}"

    print("KERNEL_OK")
</pallas_src>

<mosaic_0001>
module attributes {stable_mosaic.version = 11 : i64} {
  func.func @lenet_kernel(%arg0: i32, %arg1: memref<2x14x8x28xf32, #tpu.memory_space<vmem>>, %arg2: memref<2x5x28x96xf32, #tpu.memory_space<vmem>>, %arg3: memref<1x96xf32, #tpu.memory_space<vmem>>, %arg4: memref<2x5x96x64xf32, #tpu.memory_space<vmem>>, %arg5: memref<1x64xf32, #tpu.memory_space<vmem>>, %arg6: memref<256x120xf32, #tpu.memory_space<vmem>>, %arg7: memref<1x120xf32, #tpu.memory_space<vmem>>, %arg8: memref<120x60xf32, #tpu.memory_space<vmem>>, %arg9: memref<1x60xf32, #tpu.memory_space<vmem>>, %arg10: memref<60x128xf32, #tpu.memory_space<vmem>>, %arg11: memref<1x128xf32, #tpu.memory_space<vmem>>, %arg12: memref<8x128xf32, #tpu.memory_space<vmem>>) attributes {dimension_semantics = [#tpu.dimension_semantics<parallel>], iteration_bounds = array<i64: 1>, scalar_prefetch = 0 : i64, scratch_operands = 0 : i64, tpu.core_type = #tpu.core_type<tc>, window_params = [{transform_indices = @transform_0, window_bounds = array<i64: 2, 14, 8, 28>}, {pipeline_mode = #tpu.pipeline_mode<synchronous>, transform_indices = @transform_1, window_bounds = array<i64: 2, 5, 28, 96>}, {pipeline_mode = #tpu.pipeline_mode<synchronous>, transform_indices = @transform_2, window_bounds = array<i64: 1, 96>}, {pipeline_mode = #tpu.pipeline_mode<synchronous>, transform_indices = @transform_3, window_bounds = array<i64: 2, 5, 96, 64>}, {pipeline_mode = #tpu.pipeline_mode<synchronous>, transform_indices = @transform_4, window_bounds = array<i64: 1, 64>}, {pipeline_mode = #tpu.pipeline_mode<synchronous>, transform_indices = @transform_5, window_bounds = array<i64: 256, 120>}, {pipeline_mode = #tpu.pipeline_mode<synchronous>, transform_indices = @transform_6, window_bounds = array<i64: 1, 120>}, {pipeline_mode = #tpu.pipeline_mode<synchronous>, transform_indices = @transform_7, window_bounds = array<i64: 120, 60>}, {pipeline_mode = #tpu.pipeline_mode<synchronous>, transform_indices = @transform_8, window_bounds = array<i64: 1, 60>}, {pipeline_mode = #tpu.pipeline_mode<synchronous>, transform_indices = @transform_9, window_bounds = array<i64: 60, 128>}, {pipeline_mode = #tpu.pipeline_mode<synchronous>, transform_indices = @transform_10, window_bounds = array<i64: 1, 128>}, {transform_indices = @transform_11, window_bounds = array<i64: 8, 128>}]} {
    %c0 = arith.constant 0 : index
    %c0_0 = arith.constant 0 : index
    %c0_1 = arith.constant 0 : index
    %c0_2 = arith.constant 0 : index
    %0 = vector.load %arg1[%c0, %c0_0, %c0_1, %c0_2] : memref<2x14x8x28xf32, #tpu.memory_space<vmem>>, vector<2x14x8x28xf32>
    %1 = vector.extract_strided_slice %0 {offsets = [0, 0, 0, 0], sizes = [1, 12, 8, 28], strides = [1, 1, 1, 1]} : vector<2x14x8x28xf32> to vector<1x12x8x28xf32>
    %2 = vector.shape_cast %1 : vector<1x12x8x28xf32> to vector<12x8x28xf32>
    %3 = vector.shape_cast %2 : vector<12x8x28xf32> to vector<96x28xf32>
    %4 = vector.extract_strided_slice %0 {offsets = [1, 0, 0, 0], sizes = [1, 12, 8, 28], strides = [1, 1, 1, 1]} : vector<2x14x8x28xf32> to vector<1x12x8x28xf32>
    %5 = vector.shape_cast %4 : vector<1x12x8x28xf32> to vector<12x8x28xf32>
    %6 = vector.shape_cast %5 : vector<12x8x28xf32> to vector<96x28xf32>
    %7 = vector.extract_strided_slice %0 {offsets = [0, 1, 0, 0], sizes = [1, 12, 8, 28], strides = [1, 1, 1, 1]} : vector<2x14x8x28xf32> to vector<1x12x8x28xf32>
    %8 = vector.shape_cast %7 : vector<1x12x8x28xf32> to vector<12x8x28xf32>
    %9 = vector.shape_cast %8 : vector<12x8x28xf32> to vector<96x28xf32>
    %10 = vector.extract_strided_slice %0 {offsets = [1, 1, 0, 0], sizes = [1, 12, 8, 28], strides = [1, 1, 1, 1]} : vector<2x14x8x28xf32> to vector<1x12x8x28xf32>
    %11 = vector.shape_cast %10 : vector<1x12x8x28xf32> to vector<12x8x28xf32>
    %12 = vector.shape_cast %11 : vector<12x8x28xf32> to vector<96x28xf32>
    %13 = vector.extract_strided_slice %0 {offsets = [0, 2, 0, 0], sizes = [1, 12, 8, 28], strides = [1, 1, 1, 1]} : vector<2x14x8x28xf32> to vector<1x12x8x28xf32>
    %14 = vector.shape_cast %13 : vector<1x12x8x28xf32> to vector<12x8x28xf32>
    %15 = vector.shape_cast %14 : vector<12x8x28xf32> to vector<96x28xf32>
    %16 = vector.extract_strided_slice %0 {offsets = [1, 2, 0, 0], sizes = [1, 12, 8, 28], strides = [1, 1, 1, 1]} : vector<2x14x8x28xf32> to vector<1x12x8x28xf32>
    %17 = vector.shape_cast %16 : vector<1x12x8x28xf32> to vector<12x8x28xf32>
    %18 = vector.shape_cast %17 : vector<12x8x28xf32> to vector<96x28xf32>
    %c0_3 = arith.constant 0 : index
    %c0_4 = arith.constant 0 : index
    %c0_5 = arith.constant 0 : index
    %c0_6 = arith.constant 0 : index
    %19 = vector.load %arg2[%c0_3, %c0_4, %c0_5, %c0_6] : memref<2x5x28x96xf32, #tpu.memory_space<vmem>>, vector<2x5x28x96xf32>
    %20 = vector.extract_strided_slice %19 {offsets = [0, 0, 0, 0], sizes = [1, 1, 28, 96], strides = [1, 1, 1, 1]} : vector<2x5x28x96xf32> to vector<1x1x28x96xf32>
    %21 = vector.shape_cast %20 : vector<1x1x28x96xf32> to vector<28x96xf32>
    %cst = arith.constant dense<0.000000e+00> : vector<96x96xf32>
    %22 = tpu.matmul %3, %21, %cst {dimension_numbers = #tpu.dot_dimension_numbers<[1], [0], [0], [1], [0, 0, 1, 1], [], []>} : vector<96x28xf32>, vector<28x96xf32>, vector<96x96xf32> -> vector<96x96xf32>
    %23 = vector.extract_strided_slice %19 {offsets = [0, 1, 0, 0], sizes = [1, 1, 28, 96], strides = [1, 1, 1, 1]} : vector<2x5x28x96xf32> to vector<1x1x28x96xf32>
    %24 = vector.shape_cast %23 : vector<1x1x28x96xf32> to vector<28x96xf32>
    %cst_7 = arith.constant dense<0.000000e+00> : vector<96x96xf32>
    %25 = tpu.matmul %6, %24, %cst_7 {dimension_numbers = #tpu.dot_dimension_numbers<[1], [0], [0], [1], [0, 0, 1, 1], [], []>} : vector<96x28xf32>, vector<28x96xf32>, vector<96x96xf32> -> vector<96x96xf32>
    %26 = vector.extract_strided_slice %19 {offsets = [0, 2, 0, 0], sizes = [1, 1, 28, 96], strides = [1, 1, 1, 1]} : vector<2x5x28x96xf32> to vector<1x1x28x96xf32>
    %27 = vector.shape_cast %26 : vector<1x1x28x96xf32> to vector<28x96xf32>
    %cst_8 = arith.constant dense<0.000000e+00> : vector<96x96xf32>
    %28 = tpu.matmul %9, %27, %cst_8 {dimension_numbers = #tpu.dot_dimension_numbers<[1], [0], [0], [1], [0, 0, 1, 1], [], []>} : vector<96x28xf32>, vector<28x96xf32>, vector<96x96xf32> -> vector<96x96xf32>
    %29 = vector.extract_strided_slice %19 {offsets = [0, 3, 0, 0], sizes = [1, 1, 28, 96], strides = [1, 1, 1, 1]} : vector<2x5x28x96xf32> to vector<1x1x28x96xf32>
    %30 = vector.shape_cast %29 : vector<1x1x28x96xf32> to vector<28x96xf32>
    %cst_9 = arith.constant dense<0.000000e+00> : vector<96x96xf32>
    %31 = tpu.matmul %12, %30, %cst_9 {dimension_numbers = #tpu.dot_dimension_numbers<[1], [0], [0], [1], [0, 0, 1, 1], [], []>} : vector<96x28xf32>, vector<28x96xf32>, vector<96x96xf32> -> vector<96x96xf32>
    %32 = vector.extract_strided_slice %19 {offsets = [0, 4, 0, 0], sizes = [1, 1, 28, 96], strides = [1, 1, 1, 1]} : vector<2x5x28x96xf32> to vector<1x1x28x96xf32>
    %33 = vector.shape_cast %32 : vector<1x1x28x96xf32> to vector<28x96xf32>
    %cst_10 = arith.constant dense<0.000000e+00> : vector<96x96xf32>
    %34 = tpu.matmul %15, %33, %cst_10 {dimension_numbers = #tpu.dot_dimension_numbers<[1], [0], [0], [1], [0, 0, 1, 1], [], []>} : vector<96x28xf32>, vector<28x96xf32>, vector<96x96xf32> -> vector<96x96xf32>
    %35 = arith.addf %22, %25 : vector<96x96xf32>
    %36 = arith.addf %28, %31 : vector<96x96xf32>
    %37 = arith.addf %35, %36 : vector<96x96xf32>
    %38 = arith.addf %37, %34 : vector<96x96xf32>
    %39 = vector.extract_strided_slice %19 {offsets = [1, 0, 0, 0], sizes = [1, 1, 28, 96], strides = [1, 1, 1, 1]} : vector<2x5x28x96xf32> to vector<1x1x28x96xf32>
    %40 = vector.shape_cast %39 : vector<1x1x28x96xf32> to vector<28x96xf32>
    %cst_11 = arith.constant dense<0.000000e+00> : vector<96x96xf32>
    %41 = tpu.matmul %3, %40, %cst_11 {dimension_numbers = #tpu.dot_dimension_numbers<[1], [0], [0], [1], [0, 0, 1, 1], [], []>} : vector<96x28xf32>, vector<28x96xf32>, vector<96x96xf32> -> vector<96x96xf32>
    %42 = vector.extract_strided_slice %19 {offsets = [1, 1, 0, 0], sizes = [1, 1, 28, 96], strides = [1, 1, 1, 1]} : vector<2x5x28x96xf32> to vector<1x1x28x96xf32>
    %43 = vector.shape_cast %42 : vector<1x1x28x96xf32> to vector<28x96xf32>
    %cst_12 = arith.constant dense<0.000000e+00> : vector<96x96xf32>
    %44 = tpu.matmul %6, %43, %cst_12 {dimension_numbers = #tpu.dot_dimension_numbers<[1], [0], [0], [1], [0, 0, 1, 1], [], []>} : vector<96x28xf32>, vector<28x96xf32>, vector<96x96xf32> -> vector<96x96xf32>
    %45 = vector.extract_strided_slice %19 {offsets = [1, 2, 0, 0], sizes = [1, 1, 28, 96], strides = [1, 1, 1, 1]} : vector<2x5x28x96xf32> to vector<1x1x28x96xf32>
    %46 = vector.shape_cast %45 : vector<1x1x28x96xf32> to vector<28x96xf32>
    %cst_13 = arith.constant dense<0.000000e+00> : vector<96x96xf32>
    %47 = tpu.matmul %9, %46, %cst_13 {dimension_numbers = #tpu.dot_dimension_numbers<[1], [0], [0], [1], [0, 0, 1, 1], [], []>} : vector<96x28xf32>, vector<28x96xf32>, vector<96x96xf32> -> vector<96x96xf32>
    %48 = vector.extract_strided_slice %19 {offsets = [1, 3, 0, 0], sizes = [1, 1, 28, 96], strides = [1, 1, 1, 1]} : vector<2x5x28x96xf32> to vector<1x1x28x96xf32>
    %49 = vector.shape_cast %48 : vector<1x1x28x96xf32> to vector<28x96xf32>
    %cst_14 = arith.constant dense<0.000000e+00> : vector<96x96xf32>
    %50 = tpu.matmul %12, %49, %cst_14 {dimension_numbers = #tpu.dot_dimension_numbers<[1], [0], [0], [1], [0, 0, 1, 1], [], []>} : vector<96x28xf32>, vector<28x96xf32>, vector<96x96xf32> -> vector<96x96xf32>
    %51 = vector.extract_strided_slice %19 {offsets = [1, 4, 0, 0], sizes = [1, 1, 28, 96], strides = [1, 1, 1, 1]} : vector<2x5x28x96xf32> to vector<1x1x28x96xf32>
    %52 = vector.shape_cast %51 : vector<1x1x28x96xf32> to vector<28x96xf32>
    %cst_15 = arith.constant dense<0.000000e+00> : vector<96x96xf32>
    %53 = tpu.matmul %15, %52, %cst_15 {dimension_numbers = #tpu.dot_dimension_numbers<[1], [0], [0], [1], [0, 0, 1, 1], [], []>} : vector<96x28xf32>, vector<28x96xf32>, vector<96x96xf32> -> vector<96x96xf32>
    %54 = arith.addf %41, %44 : vector<96x96xf32>
    %55 = arith.addf %47, %50 : vector<96x96xf32>
    %56 = arith.addf %54, %55 : vector<96x96xf32>
    %57 = arith.addf %56, %53 : vector<96x96xf32>
    %58 = arith.maximumf %38, %57 : vector<96x96xf32>
    %59 = vector.extract_strided_slice %19 {offsets = [0, 0, 0, 0], sizes = [1, 1, 28, 96], strides = [1, 1, 1, 1]} : vector<2x5x28x96xf32> to vector<1x1x28x96xf32>
    %60 = vector.shape_cast %59 : vector<1x1x28x96xf32> to vector<28x96xf32>
    %cst_16 = arith.constant dense<0.000000e+00> : vector<96x96xf32>
    %61 = tpu.matmul %6, %60, %cst_16 {dimension_numbers = #tpu.dot_dimension_numbers<[1], [0], [0], [1], [0, 0, 1, 1], [], []>} : vector<96x28xf32>, vector<28x96xf32>, vector<96x96xf32> -> vector<96x96xf32>
    %62 = vector.extract_strided_slice %19 {offsets = [0, 1, 0, 0], sizes = [1, 1, 28, 96], strides = [1, 1, 1, 1]} : vector<2x5x28x96xf32> to vector<1x1x28x96xf32>
    %63 = vector.shape_cast %62 : vector<1x1x28x96xf32> to vector<28x96xf32>
    %cst_17 = arith.constant dense<0.000000e+00> : vector<96x96xf32>
    %64 = tpu.matmul %9, %63, %cst_17 {dimension_numbers = #tpu.dot_dimension_numbers<[1], [0], [0], [1], [0, 0, 1, 1], [], []>} : vector<96x28xf32>, vector<28x96xf32>, vector<96x96xf32> -> vector<96x96xf32>
    %65 = vector.extract_strided_slice %19 {offsets = [0, 2, 0, 0], sizes = [1, 1, 28, 96], strides = [1, 1, 1, 1]} : vector<2x5x28x96xf32> to vector<1x1x28x96xf32>
    %66 = vector.shape_cast %65 : vector<1x1x28x96xf32> to vector<28x96xf32>
    %cst_18 = arith.constant dense<0.000000e+00> : vector<96x96xf32>
    %67 = tpu.matmul %12, %66, %cst_18 {dimension_numbers = #tpu.dot_dimension_numbers<[1], [0], [0], [1], [0, 0, 1, 1], [], []>} : vector<96x28xf32>, vector<28x96xf32>, vector<96x96xf32> -> vector<96x96xf32>
    %68 = vector.extract_strided_slice %19 {offsets = [0, 3, 0, 0], sizes = [1, 1, 28, 96], strides = [1, 1, 1, 1]} : vector<2x5x28x96xf32> to vector<1x1x28x96xf32>
    %69 = vector.shape_cast %68 : vector<1x1x28x96xf32> to vector<28x96xf32>
    %cst_19 = arith.constant dense<0.000000e+00> : vector<96x96xf32>
    %70 = tpu.matmul %15, %69, %cst_19 {dimension_numbers = #tpu.dot_dimension_numbers<[1], [0], [0], [1], [0, 0, 1, 1], [], []>} : vector<96x28xf32>, vector<28x96xf32>, vector<96x96xf32> -> vector<96x96xf32>
    %71 = vector.extract_strided_slice %19 {offsets = [0, 4, 0, 0], sizes = [1, 1, 28, 96], strides = [1, 1, 1, 1]} : vector<2x5x28x96xf32> to vector<1x1x28x96xf32>
    %72 = vector.shape_cast %71 : vector<1x1x28x96xf32> to vector<28x96xf32>
    %cst_20 = arith.constant dense<0.000000e+00> : vector<96x96xf32>
    %73 = tpu.matmul %18, %72, %cst_20 {dimension_numbers = #tpu.dot_dimension_numbers<[1], [0], [0], [1], [0, 0, 1, 1], [], []>} : vector<96x28xf32>, vector<28x96xf32>, vector<96x96xf32> -> vector<96x96xf32>
    %74 = arith.addf %61, %64 : vector<96x96xf32>
    %75 = arith.addf %67, %70 : vector<96x96xf32>
    %76 = arith.addf %74, %75 : vector<96x96xf32>
    %77 = arith.addf %76, %73 : vector<96x96xf32>
    %78 = vector.extract_strided_slice %19 {offsets = [1, 0, 0, 0], sizes = [1, 1, 28, 96], strides = [1, 1, 1, 1]} : vector<2x5x28x96xf32> to vector<1x1x28x96xf32>
    %79 = vector.shape_cast %78 : vector<1x1x28x96xf32> to vector<28x96xf32>
    %cst_21 = arith.constant dense<0.000000e+00> : vector<96x96xf32>
    %80 = tpu.matmul %6, %79, %cst_21 {dimension_numbers = #tpu.dot_dimension_numbers<[1], [0], [0], [1], [0, 0, 1, 1], [], []>} : vector<96x28xf32>, vector<28x96xf32>, vector<96x96xf32> -> vector<96x96xf32>
    %81 = vector.extract_strided_slice %19 {offsets = [1, 1, 0, 0], sizes = [1, 1, 28, 96], strides = [1, 1, 1, 1]} : vector<2x5x28x96xf32> to vector<1x1x28x96xf32>
    %82 = vector.shape_cast %81 : vector<1x1x28x96xf32> to vector<28x96xf32>
    %cst_22 = arith.constant dense<0.000000e+00> : vector<96x96xf32>
    %83 = tpu.matmul %9, %82, %cst_22 {dimension_numbers = #tpu.dot_dimension_numbers<[1], [0], [0], [1], [0, 0, 1, 1], [], []>} : vector<96x28xf32>, vector<28x96xf32>, vector<96x96xf32> -> vector<96x96xf32>
    %84 = vector.extract_strided_slice %19 {offsets = [1, 2, 0, 0], sizes = [1, 1, 28, 96], strides = [1, 1, 1, 1]} : vector<2x5x28x96xf32> to vector<1x1x28x96xf32>
    %85 = vector.shape_cast %84 : vector<1x1x28x96xf32> to vector<28x96xf32>
    %cst_23 = arith.constant dense<0.000000e+00> : vector<96x96xf32>
    %86 = tpu.matmul %12, %85, %cst_23 {dimension_numbers = #tpu.dot_dimension_numbers<[1], [0], [0], [1], [0, 0, 1, 1], [], []>} : vector<96x28xf32>, vector<28x96xf32>, vector<96x96xf32> -> vector<96x96xf32>
    %87 = vector.extract_strided_slice %19 {offsets = [1, 3, 0, 0], sizes = [1, 1, 28, 96], strides = [1, 1, 1, 1]} : vector<2x5x28x96xf32> to vector<1x1x28x96xf32>
    %88 = vector.shape_cast %87 : vector<1x1x28x96xf32> to vector<28x96xf32>
    %cst_24 = arith.constant dense<0.000000e+00> : vector<96x96xf32>
    %89 = tpu.matmul %15, %88, %cst_24 {dimension_numbers = #tpu.dot_dimension_numbers<[1], [0], [0], [1], [0, 0, 1, 1], [], []>} : vector<96x28xf32>, vector<28x96xf32>, vector<96x96xf32> -> vector<96x96xf32>
    %90 = vector.extract_strided_slice %19 {offsets = [1, 4, 0, 0], sizes = [1, 1, 28, 96], strides = [1, 1, 1, 1]} : vector<2x5x28x96xf32> to vector<1x1x28x96xf32>
    %91 = vector.shape_cast %90 : vector<1x1x28x96xf32> to vector<28x96xf32>
    %cst_25 = arith.constant dense<0.000000e+00> : vector<96x96xf32>
    %92 = tpu.matmul %18, %91, %cst_25 {dimension_numbers = #tpu.dot_dimension_numbers<[1], [0], [0], [1], [0, 0, 1, 1], [], []>} : vector<96x28xf32>, vector<28x96xf32>, vector<96x96xf32> -> vector<96x96xf32>
    %93 = arith.addf %80, %83 : vector<96x96xf32>
    %94 = arith.addf %86, %89 : vector<96x96xf32>
    %95 = arith.addf %93, %94 : vector<96x96xf32>
    %96 = arith.addf %95, %92 : vector<96x96xf32>
    %97 = arith.maximumf %77, %96 : vector<96x96xf32>
    %98 = arith.maximumf %58, %97 : vector<96x96xf32>
    %c0_26 = arith.constant 0 : index
    %c0_27 = arith.constant 0 : index
    %99 = vector.load %arg3[%c0_26, %c0_27] : memref<1x96xf32, #tpu.memory_space<vmem>>, vector<1x96xf32>
    %100 = vector.broadcast %99 : vector<1x96xf32> to vector<96x96xf32>
    %101 = arith.addf %98, %100 : vector<96x96xf32>
    %cst_28 = arith.constant 0.000000e+00 : f32
    %102 = vector.broadcast %cst_28 : f32 to vector<96x96xf32>
    %103 = arith.maximumf %101, %102 : vector<96x96xf32>
    %104 = vector.shape_cast %103 : vector<96x96xf32> to vector<12x8x96xf32>
    %c0_29 = arith.constant 0 : index
    %c0_30 = arith.constant 0 : index
    %c0_31 = arith.constant 0 : index
    %c0_32 = arith.constant 0 : index
    %105 = vector.load %arg4[%c0_29, %c0_30, %c0_31, %c0_32] : memref<2x5x96x64xf32, #tpu.memory_space<vmem>>, vector<2x5x96x64xf32>
    %106 = vector.extract_strided_slice %104 {offsets = [0, 0, 0], sizes = [8, 8, 96], strides = [1, 1, 1]} : vector<12x8x96xf32> to vector<8x8x96xf32>
    %107 = vector.shape_cast %106 : vector<8x8x96xf32> to vector<64x96xf32>
    %108 = vector.extract_strided_slice %105 {offsets = [0, 0, 0, 0], sizes = [1, 1, 96, 64], strides = [1, 1, 1, 1]} : vector<2x5x96x64xf32> to vector<1x1x96x64xf32>
    %109 = vector.shape_cast %108 : vector<1x1x96x64xf32> to vector<96x64xf32>
    %cst_33 = arith.constant dense<0.000000e+00> : vector<64x64xf32>
    %110 = tpu.matmul %107, %109, %cst_33 {dimension_numbers = #tpu.dot_dimension_numbers<[1], [0], [0], [1], [0, 0, 1, 1], [], []>} : vector<64x96xf32>, vector<96x64xf32>, vector<64x64xf32> -> vector<64x64xf32>
    %111 = vector.extract_strided_slice %104 {offsets = [1, 0, 0], sizes = [8, 8, 96], strides = [1, 1, 1]} : vector<12x8x96xf32> to vector<8x8x96xf32>
    %112 = vector.shape_cast %111 : vector<8x8x96xf32> to vector<64x96xf32>
    %113 = vector.extract_strided_slice %105 {offsets = [0, 1, 0, 0], sizes = [1, 1, 96, 64], strides = [1, 1, 1, 1]} : vector<2x5x96x64xf32> to vector<1x1x96x64xf32>
    %114 = vector.shape_cast %113 : vector<1x1x96x64xf32> to vector<96x64xf32>
    %cst_34 = arith.constant dense<0.000000e+00> : vector<64x64xf32>
    %115 = tpu.matmul %112, %114, %cst_34 {dimension_numbers = #tpu.dot_dimension_numbers<[1], [0], [0], [1], [0, 0, 1, 1], [], []>} : vector<64x96xf32>, vector<96x64xf32>, vector<64x64xf32> -> vector<64x64xf32>
    %116 = vector.extract_strided_slice %104 {offsets = [2, 0, 0], sizes = [8, 8, 96], strides = [1, 1, 1]} : vector<12x8x96xf32> to vector<8x8x96xf32>
    %117 = vector.shape_cast %116 : vector<8x8x96xf32> to vector<64x96xf32>
    %118 = vector.extract_strided_slice %105 {offsets = [0, 2, 0, 0], sizes = [1, 1, 96, 64], strides = [1, 1, 1, 1]} : vector<2x5x96x64xf32> to vector<1x1x96x64xf32>
    %119 = vector.shape_cast %118 : vector<1x1x96x64xf32> to vector<96x64xf32>
    %cst_35 = arith.constant dense<0.000000e+00> : vector<64x64xf32>
    %120 = tpu.matmul %117, %119, %cst_35 {dimension_numbers = #tpu.dot_dimension_numbers<[1], [0], [0], [1], [0, 0, 1, 1], [], []>} : vector<64x96xf32>, vector<96x64xf32>, vector<64x64xf32> -> vector<64x64xf32>
    %121 = vector.extract_strided_slice %104 {offsets = [3, 0, 0], sizes = [8, 8, 96], strides = [1, 1, 1]} : vector<12x8x96xf32> to vector<8x8x96xf32>
    %122 = vector.shape_cast %121 : vector<8x8x96xf32> to vector<64x96xf32>
    %123 = vector.extract_strided_slice %105 {offsets = [0, 3, 0, 0], sizes = [1, 1, 96, 64], strides = [1, 1, 1, 1]} : vector<2x5x96x64xf32> to vector<1x1x96x64xf32>
    %124 = vector.shape_cast %123 : vector<1x1x96x64xf32> to vector<96x64xf32>
    %cst_36 = arith.constant dense<0.000000e+00> : vector<64x64xf32>
    %125 = tpu.matmul %122, %124, %cst_36 {dimension_numbers = #tpu.dot_dimension_numbers<[1], [0], [0], [1], [0, 0, 1, 1], [], []>} : vector<64x96xf32>, vector<96x64xf32>, vector<64x64xf32> -> vector<64x64xf32>
    %126 = vector.extract_strided_slice %104 {offsets = [4, 0, 0], sizes = [8, 8, 96], strides = [1, 1, 1]} : vector<12x8x96xf32> to vector<8x8x96xf32>
    %127 = vector.shape_cast %126 : vector<8x8x96xf32> to vector<64x96xf32>
    %128 = vector.extract_strided_slice %105 {offsets = [0, 4, 0, 0], sizes = [1, 1, 96, 64], strides = [1, 1, 1, 1]} : vector<2x5x96x64xf32> to vector<1x1x96x64xf32>
    %129 = vector.shape_cast %128 : vector<1x1x96x64xf32> to vector<96x64xf32>
    %cst_37 = arith.constant dense<0.000000e+00> : vector<64x64xf32>
    %130 = tpu.matmul %127, %129, %cst_37 {dimension_numbers = #tpu.dot_dimension_numbers<[1], [0], [0], [1], [0, 0, 1, 1], [], []>} : vector<64x96xf32>, vector<96x64xf32>, vector<64x64xf32> -> vector<64x64xf32>
    %131 = arith.addf %110, %115 : vector<64x64xf32>
    %132 = arith.addf %120, %125 : vector<64x64xf32>
    %133 = arith.addf %131, %132 : vector<64x64xf32>
    %134 = arith.addf %133, %130 : vector<64x64xf32>
    %135 = vector.extract_strided_slice %104 {offsets = [0, 0, 0], sizes = [8, 8, 96], strides = [1, 1, 1]} : vector<12x8x96xf32> to vector<8x8x96xf32>
    %136 = vector.shape_cast %135 : vector<8x8x96xf32> to vector<64x96xf32>
    %137 = vector.extract_strided_slice %105 {offsets = [1, 0, 0, 0], sizes = [1, 1, 96, 64], strides = [1, 1, 1, 1]} : vector<2x5x96x64xf32> to vector<1x1x96x64xf32>
    %138 = vector.shape_cast %137 : vector<1x1x96x64xf32> to vector<96x64xf32>
    %cst_38 = arith.constant dense<0.000000e+00> : vector<64x64xf32>
    %139 = tpu.matmul %136, %138, %cst_38 {dimension_numbers = #tpu.dot_dimension_numbers<[1], [0], [0], [1], [0, 0, 1, 1], [], []>} : vector<64x96xf32>, vector<96x64xf32>, vector<64x64xf32> -> vector<64x64xf32>
    %140 = vector.extract_strided_slice %104 {offsets = [1, 0, 0], sizes = [8, 8, 96], strides = [1, 1, 1]} : vector<12x8x96xf32> to vector<8x8x96xf32>
    %141 = vector.shape_cast %140 : vector<8x8x96xf32> to vector<64x96xf32>
    %142 = vector.extract_strided_slice %105 {offsets = [1, 1, 0, 0], sizes = [1, 1, 96, 64], strides = [1, 1, 1, 1]} : vector<2x5x96x64xf32> to vector<1x1x96x64xf32>
    %143 = vector.shape_cast %142 : vector<1x1x96x64xf32> to vector<96x64xf32>
    %cst_39 = arith.constant dense<0.000000e+00> : vector<64x64xf32>
    %144 = tpu.matmul %141, %143, %cst_39 {dimension_numbers = #tpu.dot_dimension_numbers<[1], [0], [0], [1], [0, 0, 1, 1], [], []>} : vector<64x96xf32>, vector<96x64xf32>, vector<64x64xf32> -> vector<64x64xf32>
    %145 = vector.extract_strided_slice %104 {offsets = [2, 0, 0], sizes = [8, 8, 96], strides = [1, 1, 1]} : vector<12x8x96xf32> to vector<8x8x96xf32>
    %146 = vector.shape_cast %145 : vector<8x8x96xf32> to vector<64x96xf32>
    %147 = vector.extract_strided_slice %105 {offsets = [1, 2, 0, 0], sizes = [1, 1, 96, 64], strides = [1, 1, 1, 1]} : vector<2x5x96x64xf32> to vector<1x1x96x64xf32>
    %148 = vector.shape_cast %147 : vector<1x1x96x64xf32> to vector<96x64xf32>
    %cst_40 = arith.constant dense<0.000000e+00> : vector<64x64xf32>
    %149 = tpu.matmul %146, %148, %cst_40 {dimension_numbers = #tpu.dot_dimension_numbers<[1], [0], [0], [1], [0, 0, 1, 1], [], []>} : vector<64x96xf32>, vector<96x64xf32>, vector<64x64xf32> -> vector<64x64xf32>
    %150 = vector.extract_strided_slice %104 {offsets = [3, 0, 0], sizes = [8, 8, 96], strides = [1, 1, 1]} : vector<12x8x96xf32> to vector<8x8x96xf32>
    %151 = vector.shape_cast %150 : vector<8x8x96xf32> to vector<64x96xf32>
    %152 = vector.extract_strided_slice %105 {offsets = [1, 3, 0, 0], sizes = [1, 1, 96, 64], strides = [1, 1, 1, 1]} : vector<2x5x96x64xf32> to vector<1x1x96x64xf32>
    %153 = vector.shape_cast %152 : vector<1x1x96x64xf32> to vector<96x64xf32>
    %cst_41 = arith.constant dense<0.000000e+00> : vector<64x64xf32>
    %154 = tpu.matmul %151, %153, %cst_41 {dimension_numbers = #tpu.dot_dimension_numbers<[1], [0], [0], [1], [0, 0, 1, 1], [], []>} : vector<64x96xf32>, vector<96x64xf32>, vector<64x64xf32> -> vector<64x64xf32>
    %155 = vector.extract_strided_slice %104 {offsets = [4, 0, 0], sizes = [8, 8, 96], strides = [1, 1, 1]} : vector<12x8x96xf32> to vector<8x8x96xf32>
    %156 = vector.shape_cast %155 : vector<8x8x96xf32> to vector<64x96xf32>
    %157 = vector.extract_strided_slice %105 {offsets = [1, 4, 0, 0], sizes = [1, 1, 96, 64], strides = [1, 1, 1, 1]} : vector<2x5x96x64xf32> to vector<1x1x96x64xf32>
    %158 = vector.shape_cast %157 : vector<1x1x96x64xf32> to vector<96x64xf32>
    %cst_42 = arith.constant dense<0.000000e+00> : vector<64x64xf32>
    %159 = tpu.matmul %156, %158, %cst_42 {dimension_numbers = #tpu.dot_dimension_numbers<[1], [0], [0], [1], [0, 0, 1, 1], [], []>} : vector<64x96xf32>, vector<96x64xf32>, vector<64x64xf32> -> vector<64x64xf32>
    %160 = arith.addf %139, %144 : vector<64x64xf32>
    %161 = arith.addf %149, %154 : vector<64x64xf32>
    %162 = arith.addf %160, %161 : vector<64x64xf32>
    %163 = arith.addf %162, %159 : vector<64x64xf32>
    %164 = arith.maximumf %134, %163 : vector<64x64xf32>
    %c0_43 = arith.constant 0 : index
    %c0_44 = arith.constant 0 : index
    %165 = vector.load %arg5[%c0_43, %c0_44] : memref<1x64xf32, #tpu.memory_space<vmem>>, vector<1x64xf32>
    %166 = vector.broadcast %165 : vector<1x64xf32> to vector<64x64xf32>
    %167 = arith.addf %164, %166 : vector<64x64xf32>
    %cst_45 = arith.constant 0.000000e+00 : f32
    %168 = vector.broadcast %cst_45 : f32 to vector<64x64xf32>
    %169 = arith.maximumf %167, %168 : vector<64x64xf32>
    %170 = vector.shape_cast %169 : vector<64x64xf32> to vector<4x2x8x64xf32>
    %171 = vector.extract_strided_slice %170 {offsets = [0, 0, 0, 0], sizes = [4, 1, 8, 64], strides = [1, 1, 1, 1]} : vector<4x2x8x64xf32> to vector<4x1x8x64xf32>
    %172 = vector.shape_cast %171 : vector<4x1x8x64xf32> to vector<4x8x64xf32>
    %173 = vector.extract_strided_slice %170 {offsets = [0, 1, 0, 0], sizes = [4, 1, 8, 64], strides = [1, 1, 1, 1]} : vector<4x2x8x64xf32> to vector<4x1x8x64xf32>
    %174 = vector.shape_cast %173 : vector<4x1x8x64xf32> to vector<4x8x64xf32>
    %175 = arith.maximumf %172, %174 : vector<4x8x64xf32>
    %176 = vector.extract_strided_slice %175 {offsets = [0, 0, 0], sizes = [1, 8, 64], strides = [1, 1, 1]} : vector<4x8x64xf32> to vector<1x8x64xf32>
    %177 = vector.shape_cast %176 : vector<1x8x64xf32> to vector<8x64xf32>
    %178 = vector.extract_strided_slice %175 {offsets = [1, 0, 0], sizes = [1, 8, 64], strides = [1, 1, 1]} : vector<4x8x64xf32> to vector<1x8x64xf32>
    %179 = vector.shape_cast %178 : vector<1x8x64xf32> to vector<8x64xf32>
    %180 = vector.extract_strided_slice %175 {offsets = [2, 0, 0], sizes = [1, 8, 64], strides = [1, 1, 1]} : vector<4x8x64xf32> to vector<1x8x64xf32>
    %181 = vector.shape_cast %180 : vector<1x8x64xf32> to vector<8x64xf32>
    %182 = vector.extract_strided_slice %175 {offsets = [3, 0, 0], sizes = [1, 8, 64], strides = [1, 1, 1]} : vector<4x8x64xf32> to vector<1x8x64xf32>
    %183 = vector.shape_cast %182 : vector<1x8x64xf32> to vector<8x64xf32>
    %184 = tpu.concatenate %177, %179, %181, %183 in 1 : vector<8x64xf32>, vector<8x64xf32>, vector<8x64xf32>, vector<8x64xf32> -> vector<8x256xf32>
    %c0_46 = arith.constant 0 : index
    %c0_47 = arith.constant 0 : index
    %185 = vector.load %arg6[%c0_46, %c0_47] : memref<256x120xf32, #tpu.memory_space<vmem>>, vector<256x120xf32>
    %cst_48 = arith.constant dense<0.000000e+00> : vector<8x120xf32>
    %186 = tpu.matmul %184, %185, %cst_48 {dimension_numbers = #tpu.dot_dimension_numbers<[1], [0], [0], [1], [0, 0, 1, 1], [], []>} : vector<8x256xf32>, vector<256x120xf32>, vector<8x120xf32> -> vector<8x120xf32>
    %c0_49 = arith.constant 0 : index
    %c0_50 = arith.constant 0 : index
    %187 = vector.load %arg7[%c0_49, %c0_50] : memref<1x120xf32, #tpu.memory_space<vmem>>, vector<1x120xf32>
    %188 = vector.broadcast %187 : vector<1x120xf32> to vector<8x120xf32>
    %189 = arith.addf %186, %188 : vector<8x120xf32>
    %cst_51 = arith.constant 0.000000e+00 : f32
    %190 = vector.broadcast %cst_51 : f32 to vector<8x120xf32>
    %191 = arith.maximumf %189, %190 : vector<8x120xf32>
    %c0_52 = arith.constant 0 : index
    %c0_53 = arith.constant 0 : index
    %192 = vector.load %arg8[%c0_52, %c0_53] : memref<120x60xf32, #tpu.memory_space<vmem>>, vector<120x60xf32>
    %cst_54 = arith.constant dense<0.000000e+00> : vector<8x60xf32>
    %193 = tpu.matmul %191, %192, %cst_54 {dimension_numbers = #tpu.dot_dimension_numbers<[1], [0], [0], [1], [0, 0, 1, 1], [], []>} : vector<8x120xf32>, vector<120x60xf32>, vector<8x60xf32> -> vector<8x60xf32>
    %c0_55 = arith.constant 0 : index
    %c0_56 = arith.constant 0 : index
    %194 = vector.load %arg9[%c0_55, %c0_56] : memref<1x60xf32, #tpu.memory_space<vmem>>, vector<1x60xf32>
    %195 = vector.broadcast %194 : vector<1x60xf32> to vector<8x60xf32>
    %196 = arith.addf %193, %195 : vector<8x60xf32>
    %cst_57 = arith.constant 0.000000e+00 : f32
    %197 = vector.broadcast %cst_57 : f32 to vector<8x60xf32>
    %198 = arith.maximumf %196, %197 : vector<8x60xf32>
    %c0_58 = arith.constant 0 : index
    %c0_59 = arith.constant 0 : index
    %199 = vector.load %arg10[%c0_58, %c0_59] : memref<60x128xf32, #tpu.memory_space<vmem>>, vector<60x128xf32>
    %cst_60 = arith.constant dense<0.000000e+00> : vector<8x128xf32>
    %200 = tpu.matmul %198, %199, %cst_60 {dimension_numbers = #tpu.dot_dimension_numbers<[1], [0], [0], [1], [0, 0, 1, 1], [], []>} : vector<8x60xf32>, vector<60x128xf32>, vector<8x128xf32> -> vector<8x128xf32>
    %c0_61 = arith.constant 0 : index
    %c0_62 = arith.constant 0 : index
    %201 = vector.load %arg11[%c0_61, %c0_62] : memref<1x128xf32, #tpu.memory_space<vmem>>, vector<1x128xf32>
    %202 = vector.broadcast %201 : vector<1x128xf32> to vector<8x128xf32>
    %203 = arith.addf %200, %202 : vector<8x128xf32>
    %c0_63 = arith.constant 0 : index
    %c0_64 = arith.constant 0 : index
    %204 = vector.load %arg12[%c0_63, %c0_64] : memref<8x128xf32, #tpu.memory_space<vmem>>, vector<8x128xf32>
    tpu.vector_store %arg12[%c0_63, %c0_64], %203 {strides = array<i32>} : memref<8x128xf32, #tpu.memory_space<vmem>>, vector<8x128xf32>,
    return
  }
  func.func @transform_0(%arg0: i32) -> (i32, i32, i32, i32) {
    %c0_i32 = arith.constant 0 : i32
    %c0_i32_0 = arith.constant 0 : i32
    %c0_i32_1 = arith.constant 0 : i32
    %c0_i32_2 = arith.constant 0 : i32
    return %c0_i32, %c0_i32_0, %arg0, %c0_i32_1 : i32, i32, i32, i32
  }
  func.func @transform_1(%arg0: i32) -> (i32, i32, i32, i32) {
    %c0_i32 = arith.constant 0 : i32
    %c0_i32_0 = arith.constant 0 : i32
    %c0_i32_1 = arith.constant 0 : i32
    %c0_i32_2 = arith.constant 0 : i32
    %c0_i32_3 = arith.constant 0 : i32
    return %c0_i32, %c0_i32_0, %c0_i32_1, %c0_i32_2 : i32, i32, i32, i32
  }
  func.func @transform_2(%arg0: i32) -> (i32, i32) {
    %c0_i32 = arith.constant 0 : i32
    %c0_i32_0 = arith.constant 0 : i32
    %c0_i32_1 = arith.constant 0 : i32
    return %c0_i32, %c0_i32_0 : i32, i32
  }
  func.func @transform_3(%arg0: i32) -> (i32, i32, i32, i32) {
    %c0_i32 = arith.constant 0 : i32
    %c0_i32_0 = arith.constant 0 : i32
    %c0_i32_1 = arith.constant 0 : i32
    %c0_i32_2 = arith.constant 0 : i32
    %c0_i32_3 = arith.constant 0 : i32
    return %c0_i32, %c0_i32_0, %c0_i32_1, %c0_i32_2 : i32, i32, i32, i32
  }
  func.func @transform_4(%arg0: i32) -> (i32, i32) {
    %c0_i32 = arith.constant 0 : i32
    %c0_i32_0 = arith.constant 0 : i32
    %c0_i32_1 = arith.constant 0 : i32
    return %c0_i32, %c0_i32_0 : i32, i32
  }
  func.func @transform_5(%arg0: i32) -> (i32, i32) {
    %c0_i32 = arith.constant 0 : i32
    %c0_i32_0 = arith.constant 0 : i32
    %c0_i32_1 = arith.constant 0 : i32
    return %c0_i32, %c0_i32_0 : i32, i32
  }
  func.func @transform_6(%arg0: i32) -> (i32, i32) {
    %c0_i32 = arith.constant 0 : i32
    %c0_i32_0 = arith.constant 0 : i32
    %c0_i32_1 = arith.constant 0 : i32
    return %c0_i32, %c0_i32_0 : i32, i32
  }
  func.func @transform_7(%arg0: i32) -> (i32, i32) {
    %c0_i32 = arith.constant 0 : i32
    %c0_i32_0 = arith.constant 0 : i32
    %c0_i32_1 = arith.constant 0 : i32
    return %c0_i32, %c0_i32_0 : i32, i32
  }
  func.func @transform_8(%arg0: i32) -> (i32, i32) {
    %c0_i32 = arith.constant 0 : i32
    %c0_i32_0 = arith.constant 0 : i32
    %c0_i32_1 = arith.constant 0 : i32
    return %c0_i32, %c0_i32_0 : i32, i32
  }
  func.func @transform_9(%arg0: i32) -> (i32, i32) {
    %c0_i32 = arith.constant 0 : i32
    %c0_i32_0 = arith.constant 0 : i32
    %c0_i32_1 = arith.constant 0 : i32
    return %c0_i32, %c0_i32_0 : i32, i32
  }
  func.func @transform_10(%arg0: i32) -> (i32, i32) {
    %c0_i32 = arith.constant 0 : i32
    %c0_i32_0 = arith.constant 0 : i32
    %c0_i32_1 = arith.constant 0 : i32
    return %c0_i32, %c0_i32_0 : i32, i32
  }
  func.func @transform_11(%arg0: i32) -> (i32, i32) {
    %c0_i32 = arith.constant 0 : i32
    %c0_i32_0 = arith.constant 0 : i32
    return %arg0, %c0_i32 : i32, i32
  }
}

</mosaic_0001>

<llo_original>
// kernel: network_forward.1
$region0: #{network_forward.1}
  #allocation0 [shape = 'u32[]', space=smem, size = 0x4, offset = 0x4, fixed_abs, tag = 'smem constant byte address 0x4 - core index']
  #allocation1 [shape = 'u32[72,128]{1,0:T(1,128)}', space=vmem, size = 0x9000, scoped, tag = 'internal scratch']
  %s0 = inlined_call_operand.vmem [shape: f32[2,14,8,28], index: 0, kind: input, shape index: {}]
  %s1 = inlined_call_operand.vmem [shape: f32[2,5,28,96], index: 1, kind: input, shape index: {}]
  %s2 = inlined_call_operand.vmem [shape: f32[1,96], index: 2, kind: input, shape index: {}]
  %s3 = inlined_call_operand.vmem [shape: f32[2,5,96,64], index: 3, kind: input, shape index: {}]
  %s4 = inlined_call_operand.vmem [shape: f32[1,64], index: 4, kind: input, shape index: {}]
  %s5 = inlined_call_operand.vmem [shape: f32[256,120], index: 5, kind: input, shape index: {}]
  %s6 = inlined_call_operand.vmem [shape: f32[1,120], index: 6, kind: input, shape index: {}]
  %s7 = inlined_call_operand.vmem [shape: f32[120,60], index: 7, kind: input, shape index: {}]
  %s8 = inlined_call_operand.vmem [shape: f32[1,60], index: 8, kind: input, shape index: {}]
  %s9 = inlined_call_operand.vmem [shape: f32[60,128], index: 9, kind: input, shape index: {}]
  %s10 = inlined_call_operand.vmem [shape: f32[1,128], index: 10, kind: input, shape index: {}]
  %s11 = inlined_call_operand.vmem [shape: f32[8,128], index: 11, kind: output, shape index: {}]
  %s12 = sld [smem:[#allocation0]]
  $region54: #{network_forward.1} parent=0
    _
  %s14 = ssub.s32 1, %s12
  %s15 = scalar_select 0, %s14, %s12
  // Predicated region
  $region2: #{network_forward.1} parent=0 // pred_check
    _
  $region3: #{network_forward.1} parent=0 // pred_check_branch
    %17 = sbr.rel (0) target = $region5
  $region4: #{network_forward.1} parent=0 // pred_region
    _
  $region5: #{network_forward.1} parent=0 // pred_fallthru
    _
  // Predicated region
  $region6: #{network_forward.1} parent=0 // pred_check
    _
  $region7: #{network_forward.1} parent=0 // pred_check_branch
    %19 = sbr.rel (0) target = $region9
  $region8: #{network_forward.1} parent=0 // pred_region
    _
  $region9: #{network_forward.1} parent=0 // pred_fallthru
    _
  // Predicated region
  $region10: #{network_forward.1} parent=0 // pred_check
    _
  $region11: #{network_forward.1} parent=0 // pred_check_branch
    %21 = sbr.rel (0) target = $region13
  $region12: #{network_forward.1} parent=0 // pred_region
    _
  $region13: #{network_forward.1} parent=0 // pred_fallthru
    _
  // Predicated region
  $region14: #{network_forward.1} parent=0 // pred_check
    _
  $region15: #{network_forward.1} parent=0 // pred_check_branch
    %23 = sbr.rel (0) target = $region17
  $region16: #{network_forward.1} parent=0 // pred_region
    _
  $region17: #{network_forward.1} parent=0 // pred_fallthru
    _
  // Predicated region
  $region18: #{network_forward.1} parent=0 // pred_check
    _
  $region19: #{network_forward.1} parent=0 // pred_check_branch
    %25 = sbr.rel (0) target = $region21
  $region20: #{network_forward.1} parent=0 // pred_region
    _
  $region21: #{network_forward.1} parent=0 // pred_fallthru
    _
  // Predicated region
  $region22: #{network_forward.1} parent=0 // pred_check
    _
  $region23: #{network_forward.1} parent=0 // pred_check_branch
    %27 = sbr.rel (0) target = $region25
  $region24: #{network_forward.1} parent=0 // pred_region
    _
  $region25: #{network_forward.1} parent=0 // pred_fallthru
    _
  // Predicated region
  $region26: #{network_forward.1} parent=0 // pred_check
    _
  $region27: #{network_forward.1} parent=0 // pred_check_branch
    %29 = sbr.rel (0) target = $region29
  $region28: #{network_forward.1} parent=0 // pred_region
    _
  $region29: #{network_forward.1} parent=0 // pred_fallthru
    _
  // Predicated region
  $region30: #{network_forward.1} parent=0 // pred_check
    _
  $region31: #{network_forward.1} parent=0 // pred_check_branch
    %31 = sbr.rel (0) target = $region33
  $region32: #{network_forward.1} parent=0 // pred_region
    _
  $region33: #{network_forward.1} parent=0 // pred_fallthru
    _
  // Predicated region
  $region34: #{network_forward.1} parent=0 // pred_check
    _
  $region35: #{network_forward.1} parent=0 // pred_check_branch
    %33 = sbr.rel (0) target = $region37
  $region36: #{network_forward.1} parent=0 // pred_region
    _
  $region37: #{network_forward.1} parent=0 // pred_fallthru
    _
  // Predicated region
  $region38: #{network_forward.1} parent=0 // pred_check
    _
  $region39: #{network_forward.1} parent=0 // pred_check_branch
    %35 = sbr.rel (0) target = $region41
  $region40: #{network_forward.1} parent=0 // pred_region
    _
  $region41: #{network_forward.1} parent=0 // pred_fallthru
    _
  // Predicated region
  $region42: #{network_forward.1} parent=0 // pred_check
    _
  $region43: #{network_forward.1} parent=0 // pred_check_branch
    %37 = sbr.rel (0) target = $region45
  $region44: #{network_forward.1} parent=0 // pred_region
    _
  $region45: #{network_forward.1} parent=0 // pred_fallthru
    _
  %v38 = vld [vmem:[%s0] sm:$0xff]
  %v39 = vld [vmem:[%s0 + $0x8] sm:$0xff]
  %v40 = vld [vmem:[%s0 + $0x10] sm:$0xff]
  %v41 = vld [vmem:[%s0 + $0x18] sm:$0xff]
  %v42 = vld [vmem:[%s0 + $0x20] sm:$0xff]
  %v43 = vld [vmem:[%s0 + $0x28] sm:$0xff]
  %v44 = vld [vmem:[%s0 + $0x30] sm:$0xff]
  %v45 = vld [vmem:[%s0 + $0x38] sm:$0xff]
  %v46 = vld [vmem:[%s0 + $0x40] sm:$0xff]
  %v47 = vld [vmem:[%s0 + $0x48] sm:$0xff]
  %v48 = vld [vmem:[%s0 + $0x50] sm:$0xff]
  %v49 = vld [vmem:[%s0 + $0x58] sm:$0xff]
  %v50 = vld [vmem:[%s0 + $0x60] sm:$0xff]
  %v51 = vld [vmem:[%s0 + $0x68] sm:$0xff]
  %v52 = vld [vmem:[%s0 + $0x70] sm:$0xff]
  %v53 = vld [vmem:[%s0 + $0x78] sm:$0xff]
  %v54 = vld [vmem:[%s0 + $0x80] sm:$0xff]
  %v55 = vld [vmem:[%s0 + $0x88] sm:$0xff]
  %v56 = vld [vmem:[%s0 + $0x90] sm:$0xff]
  %v57 = vld [vmem:[%s0 + $0x98] sm:$0xff]
  %v58 = vld [vmem:[%s0 + $0xa0] sm:$0xff]
  %v59 = vld [vmem:[%s0 + $0xa8] sm:$0xff]
  %v60 = vld [vmem:[%s0 + $0xb0] sm:$0xff]
  %v61 = vld [vmem:[%s0 + $0xb8] sm:$0xff]
  %v62 = vld [vmem:[%s0 + $0xc0] sm:$0xff]
  %v63 = vld [vmem:[%s0 + $0xc8] sm:$0xff]
  %v64 = vld [vmem:[%s0 + $0xd0] sm:$0xff]
  %v65 = vld [vmem:[%s0 + $0xd8] sm:$0xff]
  %v66 = vld [vmem:[%s1] sm:$0xff]
  %v67 = vld [vmem:[%s1 + $0x8] sm:$0xff]
  %v68 = vld [vmem:[%s1 + $0x10] sm:$0xff]
  %v69 = vld [vmem:[%s1 + $0x18] sm:$0xf]
  %v70 = vld [vmem:[%s1 + $0x20] sm:$0xff]
  %v71 = vld [vmem:[%s1 + $0x28] sm:$0xff]
  %v72 = vld [vmem:[%s1 + $0x30] sm:$0xff]
  %v73 = vld [vmem:[%s1 + $0x38] sm:$0xf]
  %v74 = vld [vmem:[%s1 + $0x40] sm:$0xff]
  %v75 = vld [vmem:[%s1 + $0x48] sm:$0xff]
  %v76 = vld [vmem:[%s1 + $0x50] sm:$0xff]
  %v77 = vld [vmem:[%s1 + $0x58] sm:$0xf]
  %v78 = vld [vmem:[%s1 + $0x60] sm:$0xff]
  %v79 = vld [vmem:[%s1 + $0x68] sm:$0xff]
  %v80 = vld [vmem:[%s1 + $0x70] sm:$0xff]
  %v81 = vld [vmem:[%s1 + $0x78] sm:$0xf]
  %v82 = vld [vmem:[%s1 + $0x80] sm:$0xff]
  %v83 = vld [vmem:[%s1 + $0x88] sm:$0xff]
  %v84 = vld [vmem:[%s1 + $0x90] sm:$0xff]
  %v85 = vld [vmem:[%s1 + $0x98] sm:$0xf]
  %v86 = vld [vmem:[%s1 + $0xa0] sm:$0xff]
  %v87 = vld [vmem:[%s1 + $0xa8] sm:$0xff]
  %v88 = vld [vmem:[%s1 + $0xb0] sm:$0xff]
  %v89 = vld [vmem:[%s1 + $0xb8] sm:$0xf]
  %v90 = vld [vmem:[%s1 + $0xc0] sm:$0xff]
  %v91 = vld [vmem:[%s1 + $0xc8] sm:$0xff]
  %v92 = vld [vmem:[%s1 + $0xd0] sm:$0xff]
  %v93 = vld [vmem:[%s1 + $0xd8] sm:$0xf]
  %v94 = vld [vmem:[%s1 + $0xe0] sm:$0xff]
  %v95 = vld [vmem:[%s1 + $0xe8] sm:$0xff]
  %v96 = vld [vmem:[%s1 + $0xf0] sm:$0xff]
  %v97 = vld [vmem:[%s1 + $0xf8] sm:$0xf]
  %v98 = vld [vmem:[%s1 + $0x100] sm:$0xff]
  %v99 = vld [vmem:[%s1 + $0x108] sm:$0xff]
  %v100 = vld [vmem:[%s1 + $0x110] sm:$0xff]
  %v101 = vld [vmem:[%s1 + $0x118] sm:$0xf]
  %v102 = vld [vmem:[%s1 + $0x120] sm:$0xff]
  %v103 = vld [vmem:[%s1 + $0x128] sm:$0xff]
  %v104 = vld [vmem:[%s1 + $0x130] sm:$0xff]
  %v105 = vld [vmem:[%s1 + $0x138] sm:$0xf]
  %vm106 = vcmask 228352
  %v108 = vsel %vm106, %v52, 0
  %v111 = vsel %vm106, %v53, 0
  %v114 = vsel %vm106, %v54, 0
  %v117 = vsel %vm106, %v55, 0
  %v120 = vsel %vm106, %v56, 0
  %v123 = vsel %vm106, %v57, 0
  %v126 = vsel %vm106, %v58, 0
  %v129 = vsel %vm106, %v59, 0
  %v132 = vsel %vm106, %v60, 0
  %v135 = vsel %vm106, %v61, 0
  %v138 = vsel %vm106, %v62, 0
  %v141 = vsel %vm106, %v63, 0
  %vm143 = vcmask 1043456
  %v145 = vsel %vm143, %v73, 0
  %147 = vmatpush.msra.mxu0 0.0
  %148 = vmatpush.msra.mxu0 0.0
  %149 = vmatpush.msra.mxu0 0.0
  %150 = vmatpush.msra.mxu0 0.0
  %151 = vmatpush.msra.mxu0 0.0
  %152 = vmatpush.msra.mxu0 0.0
  %153 = vmatpush.msra.mxu0 0.0
  %154 = vmatpush.msra.mxu0 0.0
  %155 = vmatpush.msra.mxu0 0.0
  %156 = vmatpush.msra.mxu0 0.0
  %157 = vmatpush.msra.mxu0 0.0
  %158 = vmatpush.msra.mxu0 0.0
  %159 = vmatpush.msra.mxu0 %v145
  %160 = vmatpush.msra.mxu0 %v72
  %161 = vmatpush.msra.mxu0 %v71
  %162 = vmatpush.msra.mxu0 %v70
  %163 = vmatmul.f32.gmra.mxu0 %v108
  %v164 = vpop.f32.mrf.mxu0
  %v165 = vadd.f32 0.0, %v164
  %166 = vmatmul.f32.gmra.mxu0 %v111
  %v167 = vpop.f32.mrf.mxu0
  %v168 = vadd.f32 0.0, %v167
  %169 = vmatmul.f32.gmra.mxu0 %v114
  %v170 = vpop.f32.mrf.mxu0
  %v171 = vadd.f32 0.0, %v170
  %172 = vmatmul.f32.gmra.mxu0 %v117
  %v173 = vpop.f32.mrf.mxu0
  %v174 = vadd.f32 0.0, %v173
  %175 = vmatmul.f32.gmra.mxu0 %v120
  %v176 = vpop.f32.mrf.mxu0
  %v177 = vadd.f32 0.0, %v176
  %178 = vmatmul.f32.gmra.mxu0 %v123
  %v179 = vpop.f32.mrf.mxu0
  %v180 = vadd.f32 0.0, %v179
  %181 = vmatmul.f32.gmra.mxu0 %v126
  %v182 = vpop.f32.mrf.mxu0
  %v183 = vadd.f32 0.0, %v182
  %184 = vmatmul.f32.gmra.mxu0 %v129
  %v185 = vpop.f32.mrf.mxu0
  %v186 = vadd.f32 0.0, %v185
  %187 = vmatmul.f32.gmra.mxu0 %v132
  %v188 = vpop.f32.mrf.mxu0
  %v189 = vadd.f32 0.0, %v188
  %190 = vmatmul.f32.gmra.mxu0 %v135
  %v191 = vpop.f32.mrf.mxu0
  %v192 = vadd.f32 0.0, %v191
  %193 = vmatmul.f32.gmra.mxu0 %v138
  %v194 = vpop.f32.mrf.mxu0
  %v195 = vadd.f32 0.0, %v194
  %196 = vmatmul.f32.gmra.mxu0 %v141
  %v197 = vpop.f32.mrf.mxu0
  %v198 = vadd.f32 0.0, %v197
  %199 = vdwg.mxu0
  %v201 = vsel %vm106, %v64, 0
  %v204 = vsel %vm143, %v81, 0
  %206 = vmatpush.msra.mxu0 0.0
  %207 = vmatpush.msra.mxu0 0.0
  %208 = vmatpush.msra.mxu0 0.0
  %209 = vmatpush.msra.mxu0 0.0
  %210 = vmatpush.msra.mxu0 0.0
  %211 = vmatpush.msra.mxu0 0.0
  %212 = vmatpush.msra.mxu0 0.0
  %213 = vmatpush.msra.mxu0 0.0
  %214 = vmatpush.msra.mxu0 0.0
  %215 = vmatpush.msra.mxu0 0.0
  %216 = vmatpush.msra.mxu0 0.0
  %217 = vmatpush.msra.mxu0 0.0
  %218 = vmatpush.msra.mxu0 %v204
  %219 = vmatpush.msra.mxu0 %v80
  %220 = vmatpush.msra.mxu0 %v79
  %221 = vmatpush.msra.mxu0 %v78
  %222 = vmatmul.f32.gmra.mxu0 %v111
  %v223 = vpop.f32.mrf.mxu0
  %v224 = vadd.f32 0.0, %v223
  %225 = vmatmul.f32.gmra.mxu0 %v114
  %v226 = vpop.f32.mrf.mxu0
  %v227 = vadd.f32 0.0, %v226
  %228 = vmatmul.f32.gmra.mxu0 %v117
  %v229 = vpop.f32.mrf.mxu0
  %v230 = vadd.f32 0.0, %v229
  %231 = vmatmul.f32.gmra.mxu0 %v120
  %v232 = vpop.f32.mrf.mxu0
  %v233 = vadd.f32 0.0, %v232
  %234 = vmatmul.f32.gmra.mxu0 %v123
  %v235 = vpop.f32.mrf.mxu0
  %v236 = vadd.f32 0.0, %v235
  %237 = vmatmul.f32.gmra.mxu0 %v126
  %v238 = vpop.f32.mrf.mxu0
  %v239 = vadd.f32 0.0, %v238
  %240 = vmatmul.f32.gmra.mxu0 %v129
  %v241 = vpop.f32.mrf.mxu0
  %v242 = vadd.f32 0.0, %v241
  %243 = vmatmul.f32.gmra.mxu0 %v132
  %v244 = vpop.f32.mrf.mxu0
  %v245 = vadd.f32 0.0, %v244
  %246 = vmatmul.f32.gmra.mxu0 %v135
  %v247 = vpop.f32.mrf.mxu0
  %v248 = vadd.f32 0.0, %v247
  %249 = vmatmul.f32.gmra.mxu0 %v138
  %v250 = vpop.f32.mrf.mxu0
  %v251 = vadd.f32 0.0, %v250
  %252 = vmatmul.f32.gmra.mxu0 %v141
  %v253 = vpop.f32.mrf.mxu0
  %v254 = vadd.f32 0.0, %v253
  %255 = vmatmul.f32.gmra.mxu0 %v201
  %v256 = vpop.f32.mrf.mxu0
  %v257 = vadd.f32 0.0, %v256
  %258 = vdwg.mxu0
  %v260 = vsel %vm106, %v40, 0
  %v263 = vsel %vm106, %v41, 0
  %v266 = vsel %vm106, %v42, 0
  %v269 = vsel %vm106, %v43, 0
  %v272 = vsel %vm106, %v44, 0
  %v275 = vsel %vm106, %v45, 0
  %v278 = vsel %vm106, %v46, 0
  %v281 = vsel %vm106, %v47, 0
  %v284 = vsel %vm106, %v48, 0
  %v287 = vsel %vm106, %v49, 0
  %v290 = vsel %vm106, %v50, 0
  %v293 = vsel %vm106, %v51, 0
  %v296 = vsel %vm143, %v85, 0
  %298 = vmatpush.msra.mxu0 0.0
  %299 = vmatpush.msra.mxu0 0.0
  %300 = vmatpush.msra.mxu0 0.0
  %301 = vmatpush.msra.mxu0 0.0
  %302 = vmatpush.msra.mxu0 0.0
  %303 = vmatpush.msra.mxu0 0.0
  %304 = vmatpush.msra.mxu0 0.0
  %305 = vmatpush.msra.mxu0 0.0
  %306 = vmatpush.msra.mxu0 0.0
  %307 = vmatpush.msra.mxu0 0.0
  %308 = vmatpush.msra.mxu0 0.0
  %309 = vmatpush.msra.mxu0 0.0
  %310 = vmatpush.msra.mxu0 %v296
  %311 = vmatpush.msra.mxu0 %v84
  %312 = vmatpush.msra.mxu0 %v83
  %313 = vmatpush.msra.mxu0 %v82
  %314 = vmatmul.f32.gmra.mxu0 %v260
  %v315 = vpop.f32.mrf.mxu0
  %v316 = vadd.f32 0.0, %v315
  %317 = vmatmul.f32.gmra.mxu0 %v263
  %v318 = vpop.f32.mrf.mxu0
  %v319 = vadd.f32 0.0, %v318
  %320 = vmatmul.f32.gmra.mxu0 %v266
  %v321 = vpop.f32.mrf.mxu0
  %v322 = vadd.f32 0.0, %v321
  %323 = vmatmul.f32.gmra.mxu0 %v269
  %v324 = vpop.f32.mrf.mxu0
  %v325 = vadd.f32 0.0, %v324
  %326 = vmatmul.f32.gmra.mxu0 %v272
  %v327 = vpop.f32.mrf.mxu0
  %v328 = vadd.f32 0.0, %v327
  %329 = vmatmul.f32.gmra.mxu0 %v275
  %v330 = vpop.f32.mrf.mxu0
  %v331 = vadd.f32 0.0, %v330
  %332 = vmatmul.f32.gmra.mxu0 %v278
  %v333 = vpop.f32.mrf.mxu0
  %v334 = vadd.f32 0.0, %v333
  %335 = vmatmul.f32.gmra.mxu0 %v281
  %v336 = vpop.f32.mrf.mxu0
  %v337 = vadd.f32 0.0, %v336
  %338 = vmatmul.f32.gmra.mxu0 %v284
  %v339 = vpop.f32.mrf.mxu0
  %v340 = vadd.f32 0.0, %v339
  %341 = vmatmul.f32.gmra.mxu0 %v287
  %v342 = vpop.f32.mrf.mxu0
  %v343 = vadd.f32 0.0, %v342
  %344 = vmatmul.f32.gmra.mxu0 %v290
  %v345 = vpop.f32.mrf.mxu0
  %v346 = vadd.f32 0.0, %v345
  %347 = vmatmul.f32.gmra.mxu0 %v293
  %v348 = vpop.f32.mrf.mxu0
  %v349 = vadd.f32 0.0, %v348
  %350 = vdwg.mxu0
  %v352 = vsel %vm106, %v38, 0
  %v355 = vsel %vm106, %v39, 0
  %v358 = vsel %vm143, %v69, 0
  %360 = vmatpush.msra.mxu0 0.0
  %361 = vmatpush.msra.mxu0 0.0
  %362 = vmatpush.msra.mxu0 0.0
  %363 = vmatpush.msra.mxu0 0.0
  %364 = vmatpush.msra.mxu0 0.0
  %365 = vmatpush.msra.mxu0 0.0
  %366 = vmatpush.msra.mxu0 0.0
  %367 = vmatpush.msra.mxu0 0.0
  %368 = vmatpush.msra.mxu0 0.0
  %369 = vmatpush.msra.mxu0 0.0
  %370 = vmatpush.msra.mxu0 0.0
  %371 = vmatpush.msra.mxu0 0.0
  %372 = vmatpush.msra.mxu0 %v358
  %373 = vmatpush.msra.mxu0 %v68
  %374 = vmatpush.msra.mxu0 %v67
  %375 = vmatpush.msra.mxu0 %v66
  %376 = vmatmul.f32.gmra.mxu0 %v352
  %v377 = vpop.f32.mrf.mxu0
  %v378 = vadd.f32 %v165, %v377
  %379 = vmatmul.f32.gmra.mxu0 %v355
  %v380 = vpop.f32.mrf.mxu0
  %v381 = vadd.f32 %v168, %v380
  %382 = vmatmul.f32.gmra.mxu0 %v260
  %v383 = vpop.f32.mrf.mxu0
  %v384 = vadd.f32 %v171, %v383
  %385 = vmatmul.f32.gmra.mxu0 %v263
  %v386 = vpop.f32.mrf.mxu0
  %v387 = vadd.f32 %v174, %v386
  %388 = vmatmul.f32.gmra.mxu0 %v266
  %v389 = vpop.f32.mrf.mxu0
  %v390 = vadd.f32 %v177, %v389
  %391 = vmatmul.f32.gmra.mxu0 %v269
  %v392 = vpop.f32.mrf.mxu0
  %v393 = vadd.f32 %v180, %v392
  %394 = vmatmul.f32.gmra.mxu0 %v272
  %v395 = vpop.f32.mrf.mxu0
  %v396 = vadd.f32 %v183, %v395
  %397 = vmatmul.f32.gmra.mxu0 %v275
  %v398 = vpop.f32.mrf.mxu0
  %v399 = vadd.f32 %v186, %v398
  %400 = vmatmul.f32.gmra.mxu0 %v278
  %v401 = vpop.f32.mrf.mxu0
  %v402 = vadd.f32 %v189, %v401
  %403 = vmatmul.f32.gmra.mxu0 %v281
  %v404 = vpop.f32.mrf.mxu0
  %v405 = vadd.f32 %v192, %v404
  %406 = vmatmul.f32.gmra.mxu0 %v284
  %v407 = vpop.f32.mrf.mxu0
  %v408 = vadd.f32 %v195, %v407
  %409 = vmatmul.f32.gmra.mxu0 %v287
  %v410 = vpop.f32.mrf.mxu0
  %v411 = vadd.f32 %v198, %v410
  %412 = vdwg.mxu0
  %v414 = vsel %vm143, %v77, 0
  %416 = vmatpush.msra.mxu0 0.0
  %417 = vmatpush.msra.mxu0 0.0
  %418 = vmatpush.msra.mxu0 0.0
  %419 = vmatpush.msra.mxu0 0.0
  %420 = vmatpush.msra.mxu0 0.0
  %421 = vmatpush.msra.mxu0 0.0
  %422 = vmatpush.msra.mxu0 0.0
  %423 = vmatpush.msra.mxu0 0.0
  %424 = vmatpush.msra.mxu0 0.0
  %425 = vmatpush.msra.mxu0 0.0
  %426 = vmatpush.msra.mxu0 0.0
  %427 = vmatpush.msra.mxu0 0.0
  %428 = vmatpush.msra.mxu0 %v414
  %429 = vmatpush.msra.mxu0 %v76
  %430 = vmatpush.msra.mxu0 %v75
  %431 = vmatpush.msra.mxu0 %v74
  %432 = vmatmul.f32.gmra.mxu0 %v355
  %v433 = vpop.f32.mrf.mxu0
  %v434 = vadd.f32 %v224, %v433
  %435 = vmatmul.f32.gmra.mxu0 %v260
  %v436 = vpop.f32.mrf.mxu0
  %v437 = vadd.f32 %v227, %v436
  %438 = vmatmul.f32.gmra.mxu0 %v263
  %v439 = vpop.f32.mrf.mxu0
  %v440 = vadd.f32 %v230, %v439
  %441 = vmatmul.f32.gmra.mxu0 %v266
  %v442 = vpop.f32.mrf.mxu0
  %v443 = vadd.f32 %v233, %v442
  %444 = vmatmul.f32.gmra.mxu0 %v269
  %v445 = vpop.f32.mrf.mxu0
  %v446 = vadd.f32 %v236, %v445
  %447 = vmatmul.f32.gmra.mxu0 %v272
  %v448 = vpop.f32.mrf.mxu0
  %v449 = vadd.f32 %v239, %v448
  %450 = vmatmul.f32.gmra.mxu0 %v275
  %v451 = vpop.f32.mrf.mxu0
  %v452 = vadd.f32 %v242, %v451
  %453 = vmatmul.f32.gmra.mxu0 %v278
  %v454 = vpop.f32.mrf.mxu0
  %v455 = vadd.f32 %v245, %v454
  %456 = vmatmul.f32.gmra.mxu0 %v281
  %v457 = vpop.f32.mrf.mxu0
  %v458 = vadd.f32 %v248, %v457
  %459 = vmatmul.f32.gmra.mxu0 %v284
  %v460 = vpop.f32.mrf.mxu0
  %v461 = vadd.f32 %v251, %v460
  %462 = vmatmul.f32.gmra.mxu0 %v287
  %v463 = vpop.f32.mrf.mxu0
  %v464 = vadd.f32 %v254, %v463
  %465 = vmatmul.f32.gmra.mxu0 %v290
  %v466 = vpop.f32.mrf.mxu0
  %v467 = vadd.f32 %v257, %v466
  %468 = vdwg.mxu0
  %v469 = vadd.f32 %v378, %v434
  %v470 = vadd.f32 %v381, %v437
  %v471 = vadd.f32 %v384, %v440
  %v472 = vadd.f32 %v387, %v443
  %v473 = vadd.f32 %v390, %v446
  %v474 = vadd.f32 %v393, %v449
  %v475 = vadd.f32 %v396, %v452
  %v476 = vadd.f32 %v399, %v455
  %v477 = vadd.f32 %v402, %v458
  %v478 = vadd.f32 %v405, %v461
  %v479 = vadd.f32 %v408, %v464
  %v480 = vadd.f32 %v411, %v467
  %v481 = vadd.f32 %v469, %v316
  %v482 = vadd.f32 %v470, %v319
  %v483 = vadd.f32 %v471, %v322
  %v484 = vadd.f32 %v472, %v325
  %v485 = vadd.f32 %v473, %v328
  %v486 = vadd.f32 %v474, %v331
  %v487 = vadd.f32 %v475, %v334
  %v488 = vadd.f32 %v476, %v337
  %v489 = vadd.f32 %v477, %v340
  %v490 = vadd.f32 %v478, %v343
  %v491 = vadd.f32 %v479, %v346
  %v492 = vadd.f32 %v480, %v349
  %v494 = vsel %vm143, %v93, 0
  %496 = vmatpush.msra.mxu0 0.0
  %497 = vmatpush.msra.mxu0 0.0
  %498 = vmatpush.msra.mxu0 0.0
  %499 = vmatpush.msra.mxu0 0.0
  %500 = vmatpush.msra.mxu0 0.0
  %501 = vmatpush.msra.mxu0 0.0
  %502 = vmatpush.msra.mxu0 0.0
  %503 = vmatpush.msra.mxu0 0.0
  %504 = vmatpush.msra.mxu0 0.0
  %505 = vmatpush.msra.mxu0 0.0
  %506 = vmatpush.msra.mxu0 0.0
  %507 = vmatpush.msra.mxu0 0.0
  %508 = vmatpush.msra.mxu0 %v494
  %509 = vmatpush.msra.mxu0 %v92
  %510 = vmatpush.msra.mxu0 %v91
  %511 = vmatpush.msra.mxu0 %v90
  %512 = vmatmul.f32.gmra.mxu0 %v108
  %v513 = vpop.f32.mrf.mxu0
  %v514 = vadd.f32 0.0, %v513
  %515 = vmatmul.f32.gmra.mxu0 %v111
  %v516 = vpop.f32.mrf.mxu0
  %v517 = vadd.f32 0.0, %v516
  %518 = vmatmul.f32.gmra.mxu0 %v114
  %v519 = vpop.f32.mrf.mxu0
  %v520 = vadd.f32 0.0, %v519
  %521 = vmatmul.f32.gmra.mxu0 %v117
  %v522 = vpop.f32.mrf.mxu0
  %v523 = vadd.f32 0.0, %v522
  %524 = vmatmul.f32.gmra.mxu0 %v120
  %v525 = vpop.f32.mrf.mxu0
  %v526 = vadd.f32 0.0, %v525
  %527 = vmatmul.f32.gmra.mxu0 %v123
  %v528 = vpop.f32.mrf.mxu0
  %v529 = vadd.f32 0.0, %v528
  %530 = vmatmul.f32.gmra.mxu0 %v126
  %v531 = vpop.f32.mrf.mxu0
  %v532 = vadd.f32 0.0, %v531
  %533 = vmatmul.f32.gmra.mxu0 %v129
  %v534 = vpop.f32.mrf.mxu0
  %v535 = vadd.f32 0.0, %v534
  %536 = vmatmul.f32.gmra.mxu0 %v132
  %v537 = vpop.f32.mrf.mxu0
  %v538 = vadd.f32 0.0, %v537
  %539 = vmatmul.f32.gmra.mxu0 %v135
  %v540 = vpop.f32.mrf.mxu0
  %v541 = vadd.f32 0.0, %v540
  %542 = vmatmul.f32.gmra.mxu0 %v138
  %v543 = vpop.f32.mrf.mxu0
  %v544 = vadd.f32 0.0, %v543
  %545 = vmatmul.f32.gmra.mxu0 %v141
  %v546 = vpop.f32.mrf.mxu0
  %v547 = vadd.f32 0.0, %v546
  %548 = vdwg.mxu0
  %v550 = vsel %vm143, %v101, 0
  %552 = vmatpush.msra.mxu0 0.0
  %553 = vmatpush.msra.mxu0 0.0
  %554 = vmatpush.msra.mxu0 0.0
  %555 = vmatpush.msra.mxu0 0.0
  %556 = vmatpush.msra.mxu0 0.0
  %557 = vmatpush.msra.mxu0 0.0
  %558 = vmatpush.msra.mxu0 0.0
  %559 = vmatpush.msra.mxu0 0.0
  %560 = vmatpush.msra.mxu0 0.0
  %561 = vmatpush.msra.mxu0 0.0
  %562 = vmatpush.msra.mxu0 0.0
  %563 = vmatpush.msra.mxu0 0.0
  %564 = vmatpush.msra.mxu0 %v550
  %565 = vmatpush.msra.mxu0 %v100
  %566 = vmatpush.msra.mxu0 %v99
  %567 = vmatpush.msra.mxu0 %v98
  %568 = vmatmul.f32.gmra.mxu0 %v111
  %v569 = vpop.f32.mrf.mxu0
  %v570 = vadd.f32 0.0, %v569
  %571 = vmatmul.f32.gmra.mxu0 %v114
  %v572 = vpop.f32.mrf.mxu0
  %v573 = vadd.f32 0.0, %v572
  %574 = vmatmul.f32.gmra.mxu0 %v117
  %v575 = vpop.f32.mrf.mxu0
  %v576 = vadd.f32 0.0, %v575
  %577 = vmatmul.f32.gmra.mxu0 %v120
  %v578 = vpop.f32.mrf.mxu0
  %v579 = vadd.f32 0.0, %v578
  %580 = vmatmul.f32.gmra.mxu0 %v123
  %v581 = vpop.f32.mrf.mxu0
  %v582 = vadd.f32 0.0, %v581
  %583 = vmatmul.f32.gmra.mxu0 %v126
  %v584 = vpop.f32.mrf.mxu0
  %v585 = vadd.f32 0.0, %v584
  %586 = vmatmul.f32.gmra.mxu0 %v129
  %v587 = vpop.f32.mrf.mxu0
  %v588 = vadd.f32 0.0, %v587
  %589 = vmatmul.f32.gmra.mxu0 %v132
  %v590 = vpop.f32.mrf.mxu0
  %v591 = vadd.f32 0.0, %v590
  %592 = vmatmul.f32.gmra.mxu0 %v135
  %v593 = vpop.f32.mrf.mxu0
  %v594 = vadd.f32 0.0, %v593
  %595 = vmatmul.f32.gmra.mxu0 %v138
  %v596 = vpop.f32.mrf.mxu0
  %v597 = vadd.f32 0.0, %v596
  %598 = vmatmul.f32.gmra.mxu0 %v141
  %v599 = vpop.f32.mrf.mxu0
  %v600 = vadd.f32 0.0, %v599
  %601 = vmatmul.f32.gmra.mxu0 %v201
  %v602 = vpop.f32.mrf.mxu0
  %v603 = vadd.f32 0.0, %v602
  %604 = vdwg.mxu0
  %v606 = vsel %vm143, %v105, 0
  %608 = vmatpush.msra.mxu0 0.0
  %609 = vmatpush.msra.mxu0 0.0
  %610 = vmatpush.msra.mxu0 0.0
  %611 = vmatpush.msra.mxu0 0.0
  %612 = vmatpush.msra.mxu0 0.0
  %613 = vmatpush.msra.mxu0 0.0
  %614 = vmatpush.msra.mxu0 0.0
  %615 = vmatpush.msra.mxu0 0.0
  %616 = vmatpush.msra.mxu0 0.0
  %617 = vmatpush.msra.mxu0 0.0
  %618 = vmatpush.msra.mxu0 0.0
  %619 = vmatpush.msra.mxu0 0.0
  %620 = vmatpush.msra.mxu0 %v606
  %621 = vmatpush.msra.mxu0 %v104
  %622 = vmatpush.msra.mxu0 %v103
  %623 = vmatpush.msra.mxu0 %v102
  %624 = vmatmul.f32.gmra.mxu0 %v260
  %v625 = vpop.f32.mrf.mxu0
  %v626 = vadd.f32 0.0, %v625
  %627 = vmatmul.f32.gmra.mxu0 %v263
  %v628 = vpop.f32.mrf.mxu0
  %v629 = vadd.f32 0.0, %v628
  %630 = vmatmul.f32.gmra.mxu0 %v266
  %v631 = vpop.f32.mrf.mxu0
  %v632 = vadd.f32 0.0, %v631
  %633 = vmatmul.f32.gmra.mxu0 %v269
  %v634 = vpop.f32.mrf.mxu0
  %v635 = vadd.f32 0.0, %v634
  %636 = vmatmul.f32.gmra.mxu0 %v272
  %v637 = vpop.f32.mrf.mxu0
  %v638 = vadd.f32 0.0, %v637
  %639 = vmatmul.f32.gmra.mxu0 %v275
  %v640 = vpop.f32.mrf.mxu0
  %v641 = vadd.f32 0.0, %v640
  %642 = vmatmul.f32.gmra.mxu0 %v278
  %v643 = vpop.f32.mrf.mxu0
  %v644 = vadd.f32 0.0, %v643
  %645 = vmatmul.f32.gmra.mxu0 %v281
  %v646 = vpop.f32.mrf.mxu0
  %v647 = vadd.f32 0.0, %v646
  %648 = vmatmul.f32.gmra.mxu0 %v284
  %v649 = vpop.f32.mrf.mxu0
  %v650 = vadd.f32 0.0, %v649
  %651 = vmatmul.f32.gmra.mxu0 %v287
  %v652 = vpop.f32.mrf.mxu0
  %v653 = vadd.f32 0.0, %v652
  %654 = vmatmul.f32.gmra.mxu0 %v290
  %v655 = vpop.f32.mrf.mxu0
  %v656 = vadd.f32 0.0, %v655
  %657 = vmatmul.f32.gmra.mxu0 %v293
  %v658 = vpop.f32.mrf.mxu0
  %v659 = vadd.f32 0.0, %v658
  %660 = vdwg.mxu0
  %v662 = vsel %vm143, %v89, 0
  %664 = vmatpush.msra.mxu0 0.0
  %665 = vmatpush.msra.mxu0 0.0
  %666 = vmatpush.msra.mxu0 0.0
  %667 = vmatpush.msra.mxu0 0.0
  %668 = vmatpush.msra.mxu0 0.0
  %669 = vmatpush.msra.mxu0 0.0
  %670 = vmatpush.msra.mxu0 0.0
  %671 = vmatpush.msra.mxu0 0.0
  %672 = vmatpush.msra.mxu0 0.0
  %673 = vmatpush.msra.mxu0 0.0
  %674 = vmatpush.msra.mxu0 0.0
  %675 = vmatpush.msra.mxu0 0.0
  %676 = vmatpush.msra.mxu0 %v662
  %677 = vmatpush.msra.mxu0 %v88
  %678 = vmatpush.msra.mxu0 %v87
  %679 = vmatpush.msra.mxu0 %v86
  %680 = vmatmul.f32.gmra.mxu0 %v352
  %v681 = vpop.f32.mrf.mxu0
  %v682 = vadd.f32 %v514, %v681
  %683 = vmatmul.f32.gmra.mxu0 %v355
  %v684 = vpop.f32.mrf.mxu0
  %v685 = vadd.f32 %v517, %v684
  %686 = vmatmul.f32.gmra.mxu0 %v260
  %v687 = vpop.f32.mrf.mxu0
  %v688 = vadd.f32 %v520, %v687
  %689 = vmatmul.f32.gmra.mxu0 %v263
  %v690 = vpop.f32.mrf.mxu0
  %v691 = vadd.f32 %v523, %v690
  %692 = vmatmul.f32.gmra.mxu0 %v266
  %v693 = vpop.f32.mrf.mxu0
  %v694 = vadd.f32 %v526, %v693
  %695 = vmatmul.f32.gmra.mxu0 %v269
  %v696 = vpop.f32.mrf.mxu0
  %v697 = vadd.f32 %v529, %v696
  %698 = vmatmul.f32.gmra.mxu0 %v272
  %v699 = vpop.f32.mrf.mxu0
  %v700 = vadd.f32 %v532, %v699
  %701 = vmatmul.f32.gmra.mxu0 %v275
  %v702 = vpop.f32.mrf.mxu0
  %v703 = vadd.f32 %v535, %v702
  %704 = vmatmul.f32.gmra.mxu0 %v278
  %v705 = vpop.f32.mrf.mxu0
  %v706 = vadd.f32 %v538, %v705
  %707 = vmatmul.f32.gmra.mxu0 %v281
  %v708 = vpop.f32.mrf.mxu0
  %v709 = vadd.f32 %v541, %v708
  %710 = vmatmul.f32.gmra.mxu0 %v284
  %v711 = vpop.f32.mrf.mxu0
  %v712 = vadd.f32 %v544, %v711
  %713 = vmatmul.f32.gmra.mxu0 %v287
  %v714 = vpop.f32.mrf.mxu0
  %v715 = vadd.f32 %v547, %v714
  %716 = vdwg.mxu0
  %v718 = vsel %vm143, %v97, 0
  %720 = vmatpush.msra.mxu0 0.0
  %721 = vmatpush.msra.mxu0 0.0
  %722 = vmatpush.msra.mxu0 0.0
  %723 = vmatpush.msra.mxu0 0.0
  %724 = vmatpush.msra.mxu0 0.0
  %725 = vmatpush.msra.mxu0 0.0
  %726 = vmatpush.msra.mxu0 0.0
  %727 = vmatpush.msra.mxu0 0.0
  %728 = vmatpush.msra.mxu0 0.0
  %729 = vmatpush.msra.mxu0 0.0
  %730 = vmatpush.msra.mxu0 0.0
  %731 = vmatpush.msra.mxu0 0.0
  %732 = vmatpush.msra.mxu0 %v718
  %733 = vmatpush.msra.mxu0 %v96
  %734 = vmatpush.msra.mxu0 %v95
  %735 = vmatpush.msra.mxu0 %v94
  %736 = vmatmul.f32.gmra.mxu0 %v355
  %v737 = vpop.f32.mrf.mxu0
  %v738 = vadd.f32 %v570, %v737
  %739 = vmatmul.f32.gmra.mxu0 %v260
  %v740 = vpop.f32.mrf.mxu0
  %v741 = vadd.f32 %v573, %v740
  %742 = vmatmul.f32.gmra.mxu0 %v263
  %v743 = vpop.f32.mrf.mxu0
  %v744 = vadd.f32 %v576, %v743
  %745 = vmatmul.f32.gmra.mxu0 %v266
  %v746 = vpop.f32.mrf.mxu0
  %v747 = vadd.f32 %v579, %v746
  %748 = vmatmul.f32.gmra.mxu0 %v269
  %v749 = vpop.f32.mrf.mxu0
  %v750 = vadd.f32 %v582, %v749
  %751 = vmatmul.f32.gmra.mxu0 %v272
  %v752 = vpop.f32.mrf.mxu0
  %v753 = vadd.f32 %v585, %v752
  %754 = vmatmul.f32.gmra.mxu0 %v275
  %v755 = vpop.f32.mrf.mxu0
  %v756 = vadd.f32 %v588, %v755
  %757 = vmatmul.f32.gmra.mxu0 %v278
  %v758 = vpop.f32.mrf.mxu0
  %v759 = vadd.f32 %v591, %v758
  %760 = vmatmul.f32.gmra.mxu0 %v281
  %v761 = vpop.f32.mrf.mxu0
  %v762 = vadd.f32 %v594, %v761
  %763 = vmatmul.f32.gmra.mxu0 %v284
  %v764 = vpop.f32.mrf.mxu0
  %v765 = vadd.f32 %v597, %v764
  %766 = vmatmul.f32.gmra.mxu0 %v287
  %v767 = vpop.f32.mrf.mxu0
  %v768 = vadd.f32 %v600, %v767
  %769 = vmatmul.f32.gmra.mxu0 %v290
  %v770 = vpop.f32.mrf.mxu0
  %v771 = vadd.f32 %v603, %v770
  %772 = vdwg.mxu0
  %v773 = vadd.f32 %v682, %v738
  %v774 = vadd.f32 %v685, %v741
  %v775 = vadd.f32 %v688, %v744
  %v776 = vadd.f32 %v691, %v747
  %v777 = vadd.f32 %v694, %v750
  %v778 = vadd.f32 %v697, %v753
  %v779 = vadd.f32 %v700, %v756
  %v780 = vadd.f32 %v703, %v759
  %v781 = vadd.f32 %v706, %v762
  %v782 = vadd.f32 %v709, %v765
  %v783 = vadd.f32 %v712, %v768
  %v784 = vadd.f32 %v715, %v771
  %v785 = vadd.f32 %v773, %v626
  %v786 = vadd.f32 %v774, %v629
  %v787 = vadd.f32 %v775, %v632
  %v788 = vadd.f32 %v776, %v635
  %v789 = vadd.f32 %v777, %v638
  %v790 = vadd.f32 %v778, %v641
  %v791 = vadd.f32 %v779, %v644
  %v792 = vadd.f32 %v780, %v647
  %v793 = vadd.f32 %v781, %v650
  %v794 = vadd.f32 %v782, %v653
  %v795 = vadd.f32 %v783, %v656
  %v796 = vadd.f32 %v784, %v659
  %v797 = vmax.f32 %v481, %v785
  %v798 = vmax.f32 %v482, %v786
  %v799 = vmax.f32 %v483, %v787
  %v800 = vmax.f32 %v484, %v788
  %v801 = vmax.f32 %v485, %v789
  %v802 = vmax.f32 %v486, %v790
  %v803 = vmax.f32 %v487, %v791
  %v804 = vmax.f32 %v488, %v792
  %v805 = vmax.f32 %v489, %v793
  %v806 = vmax.f32 %v490, %v794
  %v807 = vmax.f32 %v491, %v795
  %v808 = vmax.f32 %v492, %v796
  %809 = vmatpush.msra.mxu0 0.0
  %810 = vmatpush.msra.mxu0 0.0
  %811 = vmatpush.msra.mxu0 0.0
  %812 = vmatpush.msra.mxu0 0.0
  %813 = vmatpush.msra.mxu0 0.0
  %814 = vmatpush.msra.mxu0 0.0
  %815 = vmatpush.msra.mxu0 0.0
  %816 = vmatpush.msra.mxu0 0.0
  %817 = vmatpush.msra.mxu0 0.0
  %818 = vmatpush.msra.mxu0 0.0
  %819 = vmatpush.msra.mxu0 0.0
  %820 = vmatpush.msra.mxu0 0.0
  %821 = vmatpush.msra.mxu0 %v145
  %822 = vmatpush.msra.mxu0 %v72
  %823 = vmatpush.msra.mxu0 %v71
  %824 = vmatpush.msra.mxu0 %v70
  %825 = vmatmul.f32.gmra.mxu0 %v355
  %v826 = vpop.f32.mrf.mxu0
  %v827 = vadd.f32 0.0, %v826
  %828 = vmatmul.f32.gmra.mxu0 %v260
  %v829 = vpop.f32.mrf.mxu0
  %v830 = vadd.f32 0.0, %v829
  %831 = vmatmul.f32.gmra.mxu0 %v263
  %v832 = vpop.f32.mrf.mxu0
  %v833 = vadd.f32 0.0, %v832
  %834 = vmatmul.f32.gmra.mxu0 %v266
  %v835 = vpop.f32.mrf.mxu0
  %v836 = vadd.f32 0.0, %v835
  %837 = vmatmul.f32.gmra.mxu0 %v269
  %v838 = vpop.f32.mrf.mxu0
  %v839 = vadd.f32 0.0, %v838
  %840 = vmatmul.f32.gmra.mxu0 %v272
  %v841 = vpop.f32.mrf.mxu0
  %v842 = vadd.f32 0.0, %v841
  %843 = vmatmul.f32.gmra.mxu0 %v275
  %v844 = vpop.f32.mrf.mxu0
  %v845 = vadd.f32 0.0, %v844
  %846 = vmatmul.f32.gmra.mxu0 %v278
  %v847 = vpop.f32.mrf.mxu0
  %v848 = vadd.f32 0.0, %v847
  %849 = vmatmul.f32.gmra.mxu0 %v281
  %v850 = vpop.f32.mrf.mxu0
  %v851 = vadd.f32 0.0, %v850
  %852 = vmatmul.f32.gmra.mxu0 %v284
  %v853 = vpop.f32.mrf.mxu0
  %v854 = vadd.f32 0.0, %v853
  %855 = vmatmul.f32.gmra.mxu0 %v287
  %v856 = vpop.f32.mrf.mxu0
  %v857 = vadd.f32 0.0, %v856
  %858 = vmatmul.f32.gmra.mxu0 %v290
  %v859 = vpop.f32.mrf.mxu0
  %v860 = vadd.f32 0.0, %v859
  %861 = vdwg.mxu0
  %862 = vmatpush.msra.mxu0 0.0
  %863 = vmatpush.msra.mxu0 0.0
  %864 = vmatpush.msra.mxu0 0.0
  %865 = vmatpush.msra.mxu0 0.0
  %866 = vmatpush.msra.mxu0 0.0
  %867 = vmatpush.msra.mxu0 0.0
  %868 = vmatpush.msra.mxu0 0.0
  %869 = vmatpush.msra.mxu0 0.0
  %870 = vmatpush.msra.mxu0 0.0
  %871 = vmatpush.msra.mxu0 0.0
  %872 = vmatpush.msra.mxu0 0.0
  %873 = vmatpush.msra.mxu0 0.0
  %874 = vmatpush.msra.mxu0 %v204
  %875 = vmatpush.msra.mxu0 %v80
  %876 = vmatpush.msra.mxu0 %v79
  %877 = vmatpush.msra.mxu0 %v78
  %878 = vmatmul.f32.gmra.mxu0 %v260
  %v879 = vpop.f32.mrf.mxu0
  %v880 = vadd.f32 0.0, %v879
  %881 = vmatmul.f32.gmra.mxu0 %v263
  %v882 = vpop.f32.mrf.mxu0
  %v883 = vadd.f32 0.0, %v882
  %884 = vmatmul.f32.gmra.mxu0 %v266
  %v885 = vpop.f32.mrf.mxu0
  %v886 = vadd.f32 0.0, %v885
  %887 = vmatmul.f32.gmra.mxu0 %v269
  %v888 = vpop.f32.mrf.mxu0
  %v889 = vadd.f32 0.0, %v888
  %890 = vmatmul.f32.gmra.mxu0 %v272
  %v891 = vpop.f32.mrf.mxu0
  %v892 = vadd.f32 0.0, %v891
  %893 = vmatmul.f32.gmra.mxu0 %v275
  %v894 = vpop.f32.mrf.mxu0
  %v895 = vadd.f32 0.0, %v894
  %896 = vmatmul.f32.gmra.mxu0 %v278
  %v897 = vpop.f32.mrf.mxu0
  %v898 = vadd.f32 0.0, %v897
  %899 = vmatmul.f32.gmra.mxu0 %v281
  %v900 = vpop.f32.mrf.mxu0
  %v901 = vadd.f32 0.0, %v900
  %902 = vmatmul.f32.gmra.mxu0 %v284
  %v903 = vpop.f32.mrf.mxu0
  %v904 = vadd.f32 0.0, %v903
  %905 = vmatmul.f32.gmra.mxu0 %v287
  %v906 = vpop.f32.mrf.mxu0
  %v907 = vadd.f32 0.0, %v906
  %908 = vmatmul.f32.gmra.mxu0 %v290
  %v909 = vpop.f32.mrf.mxu0
  %v910 = vadd.f32 0.0, %v909
  %911 = vmatmul.f32.gmra.mxu0 %v293
  %v912 = vpop.f32.mrf.mxu0
  %v913 = vadd.f32 0.0, %v912
  %914 = vdwg.mxu0
  %v916 = vsel %vm106, %v65, 0
  %918 = vmatpush.msra.mxu0 0.0
  %919 = vmatpush.msra.mxu0 0.0
  %920 = vmatpush.msra.mxu0 0.0
  %921 = vmatpush.msra.mxu0 0.0
  %922 = vmatpush.msra.mxu0 0.0
  %923 = vmatpush.msra.mxu0 0.0
  %924 = vmatpush.msra.mxu0 0.0
  %925 = vmatpush.msra.mxu0 0.0
  %926 = vmatpush.msra.mxu0 0.0
  %927 = vmatpush.msra.mxu0 0.0
  %928 = vmatpush.msra.mxu0 0.0
  %929 = vmatpush.msra.mxu0 0.0
  %930 = vmatpush.msra.mxu0 %v296
  %931 = vmatpush.msra.mxu0 %v84
  %932 = vmatpush.msra.mxu0 %v83
  %933 = vmatpush.msra.mxu0 %v82
  %934 = vmatmul.f32.gmra.mxu0 %v114
  %v935 = vpop.f32.mrf.mxu0
  %v936 = vadd.f32 0.0, %v935
  %937 = vmatmul.f32.gmra.mxu0 %v117
  %v938 = vpop.f32.mrf.mxu0
  %v939 = vadd.f32 0.0, %v938
  %940 = vmatmul.f32.gmra.mxu0 %v120
  %v941 = vpop.f32.mrf.mxu0
  %v942 = vadd.f32 0.0, %v941
  %943 = vmatmul.f32.gmra.mxu0 %v123
  %v944 = vpop.f32.mrf.mxu0
  %v945 = vadd.f32 0.0, %v944
  %946 = vmatmul.f32.gmra.mxu0 %v126
  %v947 = vpop.f32.mrf.mxu0
  %v948 = vadd.f32 0.0, %v947
  %949 = vmatmul.f32.gmra.mxu0 %v129
  %v950 = vpop.f32.mrf.mxu0
  %v951 = vadd.f32 0.0, %v950
  %952 = vmatmul.f32.gmra.mxu0 %v132
  %v953 = vpop.f32.mrf.mxu0
  %v954 = vadd.f32 0.0, %v953
  %955 = vmatmul.f32.gmra.mxu0 %v135
  %v956 = vpop.f32.mrf.mxu0
  %v957 = vadd.f32 0.0, %v956
  %958 = vmatmul.f32.gmra.mxu0 %v138
  %v959 = vpop.f32.mrf.mxu0
  %v960 = vadd.f32 0.0, %v959
  %961 = vmatmul.f32.gmra.mxu0 %v141
  %v962 = vpop.f32.mrf.mxu0
  %v963 = vadd.f32 0.0, %v962
  %964 = vmatmul.f32.gmra.mxu0 %v201
  %v965 = vpop.f32.mrf.mxu0
  %v966 = vadd.f32 0.0, %v965
  %967 = vmatmul.f32.gmra.mxu0 %v916
  %v968 = vpop.f32.mrf.mxu0
  %v969 = vadd.f32 0.0, %v968
  %970 = vdwg.mxu0
  %971 = vmatpush.msra.mxu0 0.0
  %972 = vmatpush.msra.mxu0 0.0
  %973 = vmatpush.msra.mxu0 0.0
  %974 = vmatpush.msra.mxu0 0.0
  %975 = vmatpush.msra.mxu0 0.0
  %976 = vmatpush.msra.mxu0 0.0
  %977 = vmatpush.msra.mxu0 0.0
  %978 = vmatpush.msra.mxu0 0.0
  %979 = vmatpush.msra.mxu0 0.0
  %980 = vmatpush.msra.mxu0 0.0
  %981 = vmatpush.msra.mxu0 0.0
  %982 = vmatpush.msra.mxu0 0.0
  %983 = vmatpush.msra.mxu0 %v358
  %984 = vmatpush.msra.mxu0 %v68
  %985 = vmatpush.msra.mxu0 %v67
  %986 = vmatpush.msra.mxu0 %v66
  %987 = vmatmul.f32.gmra.mxu0 %v108
  %v988 = vpop.f32.mrf.mxu0
  %v989 = vadd.f32 %v827, %v988
  %990 = vmatmul.f32.gmra.mxu0 %v111
  %v991 = vpop.f32.mrf.mxu0
  %v992 = vadd.f32 %v830, %v991
  %993 = vmatmul.f32.gmra.mxu0 %v114
  %v994 = vpop.f32.mrf.mxu0
  %v995 = vadd.f32 %v833, %v994
  %996 = vmatmul.f32.gmra.mxu0 %v117
  %v997 = vpop.f32.mrf.mxu0
  %v998 = vadd.f32 %v836, %v997
  %999 = vmatmul.f32.gmra.mxu0 %v120
  %v1000 = vpop.f32.mrf.mxu0
  %v1001 = vadd.f32 %v839, %v1000
  %1002 = vmatmul.f32.gmra.mxu0 %v123
  %v1003 = vpop.f32.mrf.mxu0
  %v1004 = vadd.f32 %v842, %v1003
  %1005 = vmatmul.f32.gmra.mxu0 %v126
  %v1006 = vpop.f32.mrf.mxu0
  %v1007 = vadd.f32 %v845, %v1006
  %1008 = vmatmul.f32.gmra.mxu0 %v129
  %v1009 = vpop.f32.mrf.mxu0
  %v1010 = vadd.f32 %v848, %v1009
  %1011 = vmatmul.f32.gmra.mxu0 %v132
  %v1012 = vpop.f32.mrf.mxu0
  %v1013 = vadd.f32 %v851, %v1012
  %1014 = vmatmul.f32.gmra.mxu0 %v135
  %v1015 = vpop.f32.mrf.mxu0
  %v1016 = vadd.f32 %v854, %v1015
  %1017 = vmatmul.f32.gmra.mxu0 %v138
  %v1018 = vpop.f32.mrf.mxu0
  %v1019 = vadd.f32 %v857, %v1018
  %1020 = vmatmul.f32.gmra.mxu0 %v141
  %v1021 = vpop.f32.mrf.mxu0
  %v1022 = vadd.f32 %v860, %v1021
  %1023 = vdwg.mxu0
  %1024 = vmatpush.msra.mxu0 0.0
  %1025 = vmatpush.msra.mxu0 0.0
  %1026 = vmatpush.msra.mxu0 0.0
  %1027 = vmatpush.msra.mxu0 0.0
  %1028 = vmatpush.msra.mxu0 0.0
  %1029 = vmatpush.msra.mxu0 0.0
  %1030 = vmatpush.msra.mxu0 0.0
  %1031 = vmatpush.msra.mxu0 0.0
  %1032 = vmatpush.msra.mxu0 0.0
  %1033 = vmatpush.msra.mxu0 0.0
  %1034 = vmatpush.msra.mxu0 0.0
  %1035 = vmatpush.msra.mxu0 0.0
  %1036 = vmatpush.msra.mxu0 %v414
  %1037 = vmatpush.msra.mxu0 %v76
  %1038 = vmatpush.msra.mxu0 %v75
  %1039 = vmatpush.msra.mxu0 %v74
  %1040 = vmatmul.f32.gmra.mxu0 %v111
  %v1041 = vpop.f32.mrf.mxu0
  %v1042 = vadd.f32 %v880, %v1041
  %1043 = vmatmul.f32.gmra.mxu0 %v114
  %v1044 = vpop.f32.mrf.mxu0
  %v1045 = vadd.f32 %v883, %v1044
  %1046 = vmatmul.f32.gmra.mxu0 %v117
  %v1047 = vpop.f32.mrf.mxu0
  %v1048 = vadd.f32 %v886, %v1047
  %1049 = vmatmul.f32.gmra.mxu0 %v120
  %v1050 = vpop.f32.mrf.mxu0
  %v1051 = vadd.f32 %v889, %v1050
  %1052 = vmatmul.f32.gmra.mxu0 %v123
  %v1053 = vpop.f32.mrf.mxu0
  %v1054 = vadd.f32 %v892, %v1053
  %1055 = vmatmul.f32.gmra.mxu0 %v126
  %v1056 = vpop.f32.mrf.mxu0
  %v1057 = vadd.f32 %v895, %v1056
  %1058 = vmatmul.f32.gmra.mxu0 %v129
  %v1059 = vpop.f32.mrf.mxu0
  %v1060 = vadd.f32 %v898, %v1059
  %1061 = vmatmul.f32.gmra.mxu0 %v132
  %v1062 = vpop.f32.mrf.mxu0
  %v1063 = vadd.f32 %v901, %v1062
  %1064 = vmatmul.f32.gmra.mxu0 %v135
  %v1065 = vpop.f32.mrf.mxu0
  %v1066 = vadd.f32 %v904, %v1065
  %1067 = vmatmul.f32.gmra.mxu0 %v138
  %v1068 = vpop.f32.mrf.mxu0
  %v1069 = vadd.f32 %v907, %v1068
  %1070 = vmatmul.f32.gmra.mxu0 %v141
  %v1071 = vpop.f32.mrf.mxu0
  %v1072 = vadd.f32 %v910, %v1071
  %1073 = vmatmul.f32.gmra.mxu0 %v201
  %v1074 = vpop.f32.mrf.mxu0
  %v1075 = vadd.f32 %v913, %v1074
  %1076 = vdwg.mxu0
  %v1077 = vadd.f32 %v989, %v1042
  %v1078 = vadd.f32 %v992, %v1045
  %v1079 = vadd.f32 %v995, %v1048
  %v1080 = vadd.f32 %v998, %v1051
  %v1081 = vadd.f32 %v1001, %v1054
  %v1082 = vadd.f32 %v1004, %v1057
  %v1083 = vadd.f32 %v1007, %v1060
  %v1084 = vadd.f32 %v1010, %v1063
  %v1085 = vadd.f32 %v1013, %v1066
  %v1086 = vadd.f32 %v1016, %v1069
  %v1087 = vadd.f32 %v1019, %v1072
  %v1088 = vadd.f32 %v1022, %v1075
  %v1089 = vadd.f32 %v1077, %v936
  %v1090 = vadd.f32 %v1078, %v939
  %v1091 = vadd.f32 %v1079, %v942
  %v1092 = vadd.f32 %v1080, %v945
  %v1093 = vadd.f32 %v1081, %v948
  %v1094 = vadd.f32 %v1082, %v951
  %v1095 = vadd.f32 %v1083, %v954
  %v1096 = vadd.f32 %v1084, %v957
  %v1097 = vadd.f32 %v1085, %v960
  %v1098 = vadd.f32 %v1086, %v963
  %v1099 = vadd.f32 %v1087, %v966
  %v1100 = vadd.f32 %v1088, %v969
  %1101 = vmatpush.msra.mxu0 0.0
  %1102 = vmatpush.msra.mxu0 0.0
  %1103 = vmatpush.msra.mxu0 0.0
  %1104 = vmatpush.msra.mxu0 0.0
  %1105 = vmatpush.msra.mxu0 0.0
  %1106 = vmatpush.msra.mxu0 0.0
  %1107 = vmatpush.msra.mxu0 0.0
  %1108 = vmatpush.msra.mxu0 0.0
  %1109 = vmatpush.msra.mxu0 0.0
  %1110 = vmatpush.msra.mxu0 0.0
  %1111 = vmatpush.msra.mxu0 0.0
  %1112 = vmatpush.msra.mxu0 0.0
  %1113 = vmatpush.msra.mxu0 %v494
  %1114 = vmatpush.msra.mxu0 %v92
  %1115 = vmatpush.msra.mxu0 %v91
  %1116 = vmatpush.msra.mxu0 %v90
  %1117 = vmatmul.f32.gmra.mxu0 %v355
  %v1118 = vpop.f32.mrf.mxu0
  %v1119 = vadd.f32 0.0, %v1118
  %1120 = vmatmul.f32.gmra.mxu0 %v260
  %v1121 = vpop.f32.mrf.mxu0
  %v1122 = vadd.f32 0.0, %v1121
  %1123 = vmatmul.f32.gmra.mxu0 %v263
  %v1124 = vpop.f32.mrf.mxu0
  %v1125 = vadd.f32 0.0, %v1124
  %1126 = vmatmul.f32.gmra.mxu0 %v266
  %v1127 = vpop.f32.mrf.mxu0
  %v1128 = vadd.f32 0.0, %v1127
  %1129 = vmatmul.f32.gmra.mxu0 %v269
  %v1130 = vpop.f32.mrf.mxu0
  %v1131 = vadd.f32 0.0, %v1130
  %1132 = vmatmul.f32.gmra.mxu0 %v272
  %v1133 = vpop.f32.mrf.mxu0
  %v1134 = vadd.f32 0.0, %v1133
  %1135 = vmatmul.f32.gmra.mxu0 %v275
  %v1136 = vpop.f32.mrf.mxu0
  %v1137 = vadd.f32 0.0, %v1136
  %1138 = vmatmul.f32.gmra.mxu0 %v278
  %v1139 = vpop.f32.mrf.mxu0
  %v1140 = vadd.f32 0.0, %v1139
  %1141 = vmatmul.f32.gmra.mxu0 %v281
  %v1142 = vpop.f32.mrf.mxu0
  %v1143 = vadd.f32 0.0, %v1142
  %1144 = vmatmul.f32.gmra.mxu0 %v284
  %v1145 = vpop.f32.mrf.mxu0
  %v1146 = vadd.f32 0.0, %v1145
  %1147 = vmatmul.f32.gmra.mxu0 %v287
  %v1148 = vpop.f32.mrf.mxu0
  %v1149 = vadd.f32 0.0, %v1148
  %1150 = vmatmul.f32.gmra.mxu0 %v290
  %v1151 = vpop.f32.mrf.mxu0
  %v1152 = vadd.f32 0.0, %v1151
  %1153 = vdwg.mxu0
  %1154 = vmatpush.msra.mxu0 0.0
  %1155 = vmatpush.msra.mxu0 0.0
  %1156 = vmatpush.msra.mxu0 0.0
  %1157 = vmatpush.msra.mxu0 0.0
  %1158 = vmatpush.msra.mxu0 0.0
  %1159 = vmatpush.msra.mxu0 0.0
  %1160 = vmatpush.msra.mxu0 0.0
  %1161 = vmatpush.msra.mxu0 0.0
  %1162 = vmatpush.msra.mxu0 0.0
  %1163 = vmatpush.msra.mxu0 0.0
  %1164 = vmatpush.msra.mxu0 0.0
  %1165 = vmatpush.msra.mxu0 0.0
  %1166 = vmatpush.msra.mxu0 %v550
  %1167 = vmatpush.msra.mxu0 %v100
  %1168 = vmatpush.msra.mxu0 %v99
  %1169 = vmatpush.msra.mxu0 %v98
  %1170 = vmatmul.f32.gmra.mxu0 %v260
  %v1171 = vpop.f32.mrf.mxu0
  %v1172 = vadd.f32 0.0, %v1171
  %1173 = vmatmul.f32.gmra.mxu0 %v263
  %v1174 = vpop.f32.mrf.mxu0
  %v1175 = vadd.f32 0.0, %v1174
  %1176 = vmatmul.f32.gmra.mxu0 %v266
  %v1177 = vpop.f32.mrf.mxu0
  %v1178 = vadd.f32 0.0, %v1177
  %1179 = vmatmul.f32.gmra.mxu0 %v269
  %v1180 = vpop.f32.mrf.mxu0
  %v1181 = vadd.f32 0.0, %v1180
  %1182 = vmatmul.f32.gmra.mxu0 %v272
  %v1183 = vpop.f32.mrf.mxu0
  %v1184 = vadd.f32 0.0, %v1183
  %1185 = vmatmul.f32.gmra.mxu0 %v275
  %v1186 = vpop.f32.mrf.mxu0
  %v1187 = vadd.f32 0.0, %v1186
  %1188 = vmatmul.f32.gmra.mxu0 %v278
  %v1189 = vpop.f32.mrf.mxu0
  %v1190 = vadd.f32 0.0, %v1189
  %1191 = vmatmul.f32.gmra.mxu0 %v281
  %v1192 = vpop.f32.mrf.mxu0
  %v1193 = vadd.f32 0.0, %v1192
  %1194 = vmatmul.f32.gmra.mxu0 %v284
  %v1195 = vpop.f32.mrf.mxu0
  %v1196 = vadd.f32 0.0, %v1195
  %1197 = vmatmul.f32.gmra.mxu0 %v287
  %v1198 = vpop.f32.mrf.mxu0
  %v1199 = vadd.f32 0.0, %v1198
  %1200 = vmatmul.f32.gmra.mxu0 %v290
  %v1201 = vpop.f32.mrf.mxu0
  %v1202 = vadd.f32 0.0, %v1201
  %1203 = vmatmul.f32.gmra.mxu0 %v293
  %v1204 = vpop.f32.mrf.mxu0
  %v1205 = vadd.f32 0.0, %v1204
  %1206 = vdwg.mxu0
  %1207 = vmatpush.msra.mxu0 0.0
  %1208 = vmatpush.msra.mxu0 0.0
  %1209 = vmatpush.msra.mxu0 0.0
  %1210 = vmatpush.msra.mxu0 0.0
  %1211 = vmatpush.msra.mxu0 0.0
  %1212 = vmatpush.msra.mxu0 0.0
  %1213 = vmatpush.msra.mxu0 0.0
  %1214 = vmatpush.msra.mxu0 0.0
  %1215 = vmatpush.msra.mxu0 0.0
  %1216 = vmatpush.msra.mxu0 0.0
  %1217 = vmatpush.msra.mxu0 0.0
  %1218 = vmatpush.msra.mxu0 0.0
  %1219 = vmatpush.msra.mxu0 %v606
  %1220 = vmatpush.msra.mxu0 %v104
  %1221 = vmatpush.msra.mxu0 %v103
  %1222 = vmatpush.msra.mxu0 %v102
  %1223 = vmatmul.f32.gmra.mxu0 %v114
  %v1224 = vpop.f32.mrf.mxu0
  %v1225 = vadd.f32 0.0, %v1224
  %1226 = vmatmul.f32.gmra.mxu0 %v117
  %v1227 = vpop.f32.mrf.mxu0
  %v1228 = vadd.f32 0.0, %v1227
  %1229 = vmatmul.f32.gmra.mxu0 %v120
  %v1230 = vpop.f32.mrf.mxu0
  %v1231 = vadd.f32 0.0, %v1230
  %1232 = vmatmul.f32.gmra.mxu0 %v123
  %v1233 = vpop.f32.mrf.mxu0
  %v1234 = vadd.f32 0.0, %v1233
  %1235 = vmatmul.f32.gmra.mxu0 %v126
  %v1236 = vpop.f32.mrf.mxu0
  %v1237 = vadd.f32 0.0, %v1236
  %1238 = vmatmul.f32.gmra.mxu0 %v129
  %v1239 = vpop.f32.mrf.mxu0
  %v1240 = vadd.f32 0.0, %v1239
  %1241 = vmatmul.f32.gmra.mxu0 %v132
  %v1242 = vpop.f32.mrf.mxu0
  %v1243 = vadd.f32 0.0, %v1242
  %1244 = vmatmul.f32.gmra.mxu0 %v135
  %v1245 = vpop.f32.mrf.mxu0
  %v1246 = vadd.f32 0.0, %v1245
  %1247 = vmatmul.f32.gmra.mxu0 %v138
  %v1248 = vpop.f32.mrf.mxu0
  %v1249 = vadd.f32 0.0, %v1248
  %1250 = vmatmul.f32.gmra.mxu0 %v141
  %v1251 = vpop.f32.mrf.mxu0
  %v1252 = vadd.f32 0.0, %v1251
  %1253 = vmatmul.f32.gmra.mxu0 %v201
  %v1254 = vpop.f32.mrf.mxu0
  %v1255 = vadd.f32 0.0, %v1254
  %1256 = vmatmul.f32.gmra.mxu0 %v916
  %v1257 = vpop.f32.mrf.mxu0
  %v1258 = vadd.f32 0.0, %v1257
  %1259 = vdwg.mxu0
  %1260 = vmatpush.msra.mxu0 0.0
  %1261 = vmatpush.msra.mxu0 0.0
  %1262 = vmatpush.msra.mxu0 0.0
  %1263 = vmatpush.msra.mxu0 0.0
  %1264 = vmatpush.msra.mxu0 0.0
  %1265 = vmatpush.msra.mxu0 0.0
  %1266 = vmatpush.msra.mxu0 0.0
  %1267 = vmatpush.msra.mxu0 0.0
  %1268 = vmatpush.msra.mxu0 0.0
  %1269 = vmatpush.msra.mxu0 0.0
  %1270 = vmatpush.msra.mxu0 0.0
  %1271 = vmatpush.msra.mxu0 0.0
  %1272 = vmatpush.msra.mxu0 %v662
  %1273 = vmatpush.msra.mxu0 %v88
  %1274 = vmatpush.msra.mxu0 %v87
  %1275 = vmatpush.msra.mxu0 %v86
  %1276 = vmatmul.f32.gmra.mxu0 %v108
  %v1277 = vpop.f32.mrf.mxu0
  %v1278 = vadd.f32 %v1119, %v1277
  %1279 = vmatmul.f32.gmra.mxu0 %v111
  %v1280 = vpop.f32.mrf.mxu0
  %v1281 = vadd.f32 %v1122, %v1280
  %1282 = vmatmul.f32.gmra.mxu0 %v114
  %v1283 = vpop.f32.mrf.mxu0
  %v1284 = vadd.f32 %v1125, %v1283
  %1285 = vmatmul.f32.gmra.mxu0 %v117
  %v1286 = vpop.f32.mrf.mxu0
  %v1287 = vadd.f32 %v1128, %v1286
  %1288 = vmatmul.f32.gmra.mxu0 %v120
  %v1289 = vpop.f32.mrf.mxu0
  %v1290 = vadd.f32 %v1131, %v1289
  %1291 = vmatmul.f32.gmra.mxu0 %v123
  %v1292 = vpop.f32.mrf.mxu0
  %v1293 = vadd.f32 %v1134, %v1292
  %1294 = vmatmul.f32.gmra.mxu0 %v126
  %v1295 = vpop.f32.mrf.mxu0
  %v1296 = vadd.f32 %v1137, %v1295
  %1297 = vmatmul.f32.gmra.mxu0 %v129
  %v1298 = vpop.f32.mrf.mxu0
  %v1299 = vadd.f32 %v1140, %v1298
  %1300 = vmatmul.f32.gmra.mxu0 %v132
  %v1301 = vpop.f32.mrf.mxu0
  %v1302 = vadd.f32 %v1143, %v1301
  %1303 = vmatmul.f32.gmra.mxu0 %v135
  %v1304 = vpop.f32.mrf.mxu0
  %v1305 = vadd.f32 %v1146, %v1304
  %1306 = vmatmul.f32.gmra.mxu0 %v138
  %v1307 = vpop.f32.mrf.mxu0
  %v1308 = vadd.f32 %v1149, %v1307
  %1309 = vmatmul.f32.gmra.mxu0 %v141
  %v1310 = vpop.f32.mrf.mxu0
  %v1311 = vadd.f32 %v1152, %v1310
  %1312 = vdwg.mxu0
  %1313 = vmatpush.msra.mxu0 0.0
  %1314 = vmatpush.msra.mxu0 0.0
  %1315 = vmatpush.msra.mxu0 0.0
  %1316 = vmatpush.msra.mxu0 0.0
  %1317 = vmatpush.msra.mxu0 0.0
  %1318 = vmatpush.msra.mxu0 0.0
  %1319 = vmatpush.msra.mxu0 0.0
  %1320 = vmatpush.msra.mxu0 0.0
  %1321 = vmatpush.msra.mxu0 0.0
  %1322 = vmatpush.msra.mxu0 0.0
  %1323 = vmatpush.msra.mxu0 0.0
  %1324 = vmatpush.msra.mxu0 0.0
  %1325 = vmatpush.msra.mxu0 %v718
  %1326 = vmatpush.msra.mxu0 %v96
  %1327 = vmatpush.msra.mxu0 %v95
  %1328 = vmatpush.msra.mxu0 %v94
  %1329 = vmatmul.f32.gmra.mxu0 %v111
  %v1330 = vpop.f32.mrf.mxu0
  %v1331 = vadd.f32 %v1172, %v1330
  %1332 = vmatmul.f32.gmra.mxu0 %v114
  %v1333 = vpop.f32.mrf.mxu0
  %v1334 = vadd.f32 %v1175, %v1333
  %1335 = vmatmul.f32.gmra.mxu0 %v117
  %v1336 = vpop.f32.mrf.mxu0
  %v1337 = vadd.f32 %v1178, %v1336
  %1338 = vmatmul.f32.gmra.mxu0 %v120
  %v1339 = vpop.f32.mrf.mxu0
  %v1340 = vadd.f32 %v1181, %v1339
  %1341 = vmatmul.f32.gmra.mxu0 %v123
  %v1342 = vpop.f32.mrf.mxu0
  %v1343 = vadd.f32 %v1184, %v1342
  %1344 = vmatmul.f32.gmra.mxu0 %v126
  %v1345 = vpop.f32.mrf.mxu0
  %v1346 = vadd.f32 %v1187, %v1345
  %1347 = vmatmul.f32.gmra.mxu0 %v129
  %v1348 = vpop.f32.mrf.mxu0
  %v1349 = vadd.f32 %v1190, %v1348
  %1350 = vmatmul.f32.gmra.mxu0 %v132
  %v1351 = vpop.f32.mrf.mxu0
  %v1352 = vadd.f32 %v1193, %v1351
  %1353 = vmatmul.f32.gmra.mxu0 %v135
  %v1354 = vpop.f32.mrf.mxu0
  %v1355 = vadd.f32 %v1196, %v1354
  %1356 = vmatmul.f32.gmra.mxu0 %v138
  %v1357 = vpop.f32.mrf.mxu0
  %v1358 = vadd.f32 %v1199, %v1357
  %1359 = vmatmul.f32.gmra.mxu0 %v141
  %v1360 = vpop.f32.mrf.mxu0
  %v1361 = vadd.f32 %v1202, %v1360
  %1362 = vmatmul.f32.gmra.mxu0 %v201
  %v1363 = vpop.f32.mrf.mxu0
  %v1364 = vadd.f32 %v1205, %v1363
  %1365 = vdwg.mxu0
  %v1366 = vadd.f32 %v1278, %v1331
  %v1367 = vadd.f32 %v1281, %v1334
  %v1368 = vadd.f32 %v1284, %v1337
  %v1369 = vadd.f32 %v1287, %v1340
  %v1370 = vadd.f32 %v1290, %v1343
  %v1371 = vadd.f32 %v1293, %v1346
  %v1372 = vadd.f32 %v1296, %v1349
  %v1373 = vadd.f32 %v1299, %v1352
  %v1374 = vadd.f32 %v1302, %v1355
  %v1375 = vadd.f32 %v1305, %v1358
  %v1376 = vadd.f32 %v1308, %v1361
  %v1377 = vadd.f32 %v1311, %v1364
  %v1378 = vadd.f32 %v1366, %v1225
  %v1379 = vadd.f32 %v1367, %v1228
  %v1380 = vadd.f32 %v1368, %v1231
  %v1381 = vadd.f32 %v1369, %v1234
  %v1382 = vadd.f32 %v1370, %v1237
  %v1383 = vadd.f32 %v1371, %v1240
  %v1384 = vadd.f32 %v1372, %v1243
  %v1385 = vadd.f32 %v1373, %v1246
  %v1386 = vadd.f32 %v1374, %v1249
  %v1387 = vadd.f32 %v1375, %v1252
  %v1388 = vadd.f32 %v1376, %v1255
  %v1389 = vadd.f32 %v1377, %v1258
  %v1390 = vmax.f32 %v1089, %v1378
  %v1391 = vmax.f32 %v1090, %v1379
  %v1392 = vmax.f32 %v1091, %v1380
  %v1393 = vmax.f32 %v1092, %v1381
  %v1394 = vmax.f32 %v1093, %v1382
  %v1395 = vmax.f32 %v1094, %v1383
  %v1396 = vmax.f32 %v1095, %v1384
  %v1397 = vmax.f32 %v1096, %v1385
  %v1398 = vmax.f32 %v1097, %v1386
  %v1399 = vmax.f32 %v1098, %v1387
  %v1400 = vmax.f32 %v1099, %v1388
  %v1401 = vmax.f32 %v1100, %v1389
  %v1402 = vmax.f32 %v797, %v1390
  %v1403 = vmax.f32 %v798, %v1391
  %v1404 = vmax.f32 %v799, %v1392
  %v1405 = vmax.f32 %v800, %v1393
  %v1406 = vmax.f32 %v801, %v1394
  %v1407 = vmax.f32 %v802, %v1395
  %v1408 = vmax.f32 %v803, %v1396
  %v1409 = vmax.f32 %v804, %v1397
  %v1410 = vmax.f32 %v805, %v1398
  %v1411 = vmax.f32 %v806, %v1399
  %v1412 = vmax.f32 %v807, %v1400
  %v1413 = vmax.f32 %v808, %v1401
  %v1414 = vld [vmem:[%s2] sm:$0x1]
  %v1416 = vperm.slane %v1414, 0
  %v1418 = vadd.f32 %v1402, %v1416
  %v1419 = vadd.f32 %v1403, %v1416
  %v1420 = vadd.f32 %v1404, %v1416
  %v1421 = vadd.f32 %v1405, %v1416
  %v1422 = vadd.f32 %v1406, %v1416
  %v1423 = vadd.f32 %v1407, %v1416
  %v1424 = vadd.f32 %v1408, %v1416
  %v1425 = vadd.f32 %v1409, %v1416
  %v1426 = vadd.f32 %v1410, %v1416
  %v1427 = vadd.f32 %v1411, %v1416
  %v1428 = vadd.f32 %v1412, %v1416
  %v1429 = vadd.f32 %v1413, %v1416
  %v1430 = vmax.f32 %v1418, 0.0
  %v1431 = vmax.f32 %v1419, 0.0
  %v1432 = vmax.f32 %v1420, 0.0
  %v1433 = vmax.f32 %v1421, 0.0
  %v1434 = vmax.f32 %v1422, 0.0
  %v1435 = vmax.f32 %v1423, 0.0
  %v1436 = vmax.f32 %v1424, 0.0
  %v1437 = vmax.f32 %v1425, 0.0
  %v1438 = vmax.f32 %v1426, 0.0
  %v1439 = vmax.f32 %v1427, 0.0
  %v1440 = vmax.f32 %v1428, 0.0
  %v1441 = vmax.f32 %v1429, 0.0
  %v1442 = vld [vmem:[%s3] sm:$0xff]
  %v1443 = vld [vmem:[%s3 + $0x8] sm:$0xff]
  %v1444 = vld [vmem:[%s3 + $0x10] sm:$0xff]
  %v1445 = vld [vmem:[%s3 + $0x18] sm:$0xff]
  %v1446 = vld [vmem:[%s3 + $0x20] sm:$0xff]
  %v1447 = vld [vmem:[%s3 + $0x28] sm:$0xff]
  %v1448 = vld [vmem:[%s3 + $0x30] sm:$0xff]
  %v1449 = vld [vmem:[%s3 + $0x38] sm:$0xff]
  %v1450 = vld [vmem:[%s3 + $0x40] sm:$0xff]
  %v1451 = vld [vmem:[%s3 + $0x48] sm:$0xff]
  %v1452 = vld [vmem:[%s3 + $0x50] sm:$0xff]
  %v1453 = vld [vmem:[%s3 + $0x58] sm:$0xff]
  %v1454 = vld [vmem:[%s3 + $0x60] sm:$0xff]
  %v1455 = vld [vmem:[%s3 + $0x68] sm:$0xff]
  %v1456 = vld [vmem:[%s3 + $0x70] sm:$0xff]
  %v1457 = vld [vmem:[%s3 + $0x78] sm:$0xff]
  %v1458 = vld [vmem:[%s3 + $0x80] sm:$0xff]
  %v1459 = vld [vmem:[%s3 + $0x88] sm:$0xff]
  %v1460 = vld [vmem:[%s3 + $0x90] sm:$0xff]
  %v1461 = vld [vmem:[%s3 + $0x98] sm:$0xff]
  %v1462 = vld [vmem:[%s3 + $0xa0] sm:$0xff]
  %v1463 = vld [vmem:[%s3 + $0xa8] sm:$0xff]
  %v1464 = vld [vmem:[%s3 + $0xb0] sm:$0xff]
  %v1465 = vld [vmem:[%s3 + $0xb8] sm:$0xff]
  %v1466 = vld [vmem:[%s3 + $0xc0] sm:$0xff]
  %v1467 = vld [vmem:[%s3 + $0xc8] sm:$0xff]
  %v1468 = vld [vmem:[%s3 + $0xd0] sm:$0xff]
  %v1469 = vld [vmem:[%s3 + $0xd8] sm:$0xff]
  %v1470 = vld [vmem:[%s3 + $0xe0] sm:$0xff]
  %v1471 = vld [vmem:[%s3 + $0xe8] sm:$0xff]
  %v1472 = vld [vmem:[%s3 + $0xf0] sm:$0xff]
  %v1473 = vld [vmem:[%s3 + $0xf8] sm:$0xff]
  %v1474 = vld [vmem:[%s3 + $0x100] sm:$0xff]
  %v1475 = vld [vmem:[%s3 + $0x108] sm:$0xff]
  %v1476 = vld [vmem:[%s3 + $0x110] sm:$0xff]
  %v1477 = vld [vmem:[%s3 + $0x118] sm:$0xff]
  %v1478 = vld [vmem:[%s3 + $0x120] sm:$0xff]
  %v1479 = vld [vmem:[%s3 + $0x128] sm:$0xff]
  %v1480 = vld [vmem:[%s3 + $0x130] sm:$0xff]
  %v1481 = vld [vmem:[%s3 + $0x138] sm:$0xff]
  %v1482 = vld [vmem:[%s3 + $0x140] sm:$0xff]
  %v1483 = vld [vmem:[%s3 + $0x148] sm:$0xff]
  %v1484 = vld [vmem:[%s3 + $0x150] sm:$0xff]
  %v1485 = vld [vmem:[%s3 + $0x158] sm:$0xff]
  %v1486 = vld [vmem:[%s3 + $0x160] sm:$0xff]
  %v1487 = vld [vmem:[%s3 + $0x168] sm:$0xff]
  %v1488 = vld [vmem:[%s3 + $0x170] sm:$0xff]
  %v1489 = vld [vmem:[%s3 + $0x178] sm:$0xff]
  %v1490 = vld [vmem:[%s3 + $0x180] sm:$0xff]
  %v1491 = vld [vmem:[%s3 + $0x188] sm:$0xff]
  %v1492 = vld [vmem:[%s3 + $0x190] sm:$0xff]
  %v1493 = vld [vmem:[%s3 + $0x198] sm:$0xff]
  %v1494 = vld [vmem:[%s3 + $0x1a0] sm:$0xff]
  %v1495 = vld [vmem:[%s3 + $0x1a8] sm:$0xff]
  %v1496 = vld [vmem:[%s3 + $0x1b0] sm:$0xff]
  %v1497 = vld [vmem:[%s3 + $0x1b8] sm:$0xff]
  %v1498 = vld [vmem:[%s3 + $0x1c0] sm:$0xff]
  %v1499 = vld [vmem:[%s3 + $0x1c8] sm:$0xff]
  %v1500 = vld [vmem:[%s3 + $0x1d0] sm:$0xff]
  %v1501 = vld [vmem:[%s3 + $0x1d8] sm:$0xff]
  %v1502 = vld [vmem:[%s3 + $0x1e0] sm:$0xff]
  %v1503 = vld [vmem:[%s3 + $0x1e8] sm:$0xff]
  %v1504 = vld [vmem:[%s3 + $0x1f0] sm:$0xff]
  %v1505 = vld [vmem:[%s3 + $0x1f8] sm:$0xff]
  %v1506 = vld [vmem:[%s3 + $0x200] sm:$0xff]
  %v1507 = vld [vmem:[%s3 + $0x208] sm:$0xff]
  %v1508 = vld [vmem:[%s3 + $0x210] sm:$0xff]
  %v1509 = vld [vmem:[%s3 + $0x218] sm:$0xff]
  %v1510 = vld [vmem:[%s3 + $0x220] sm:$0xff]
  %v1511 = vld [vmem:[%s3 + $0x228] sm:$0xff]
  %v1512 = vld [vmem:[%s3 + $0x230] sm:$0xff]
  %v1513 = vld [vmem:[%s3 + $0x238] sm:$0xff]
  %v1514 = vld [vmem:[%s3 + $0x240] sm:$0xff]
  %v1515 = vld [vmem:[%s3 + $0x248] sm:$0xff]
  %v1516 = vld [vmem:[%s3 + $0x250] sm:$0xff]
  %v1517 = vld [vmem:[%s3 + $0x258] sm:$0xff]
  %v1518 = vld [vmem:[%s3 + $0x260] sm:$0xff]
  %v1519 = vld [vmem:[%s3 + $0x268] sm:$0xff]
  %v1520 = vld [vmem:[%s3 + $0x270] sm:$0xff]
  %v1521 = vld [vmem:[%s3 + $0x278] sm:$0xff]
  %v1522 = vld [vmem:[%s3 + $0x280] sm:$0xff]
  %v1523 = vld [vmem:[%s3 + $0x288] sm:$0xff]
  %v1524 = vld [vmem:[%s3 + $0x290] sm:$0xff]
  %v1525 = vld [vmem:[%s3 + $0x298] sm:$0xff]
  %v1526 = vld [vmem:[%s3 + $0x2a0] sm:$0xff]
  %v1527 = vld [vmem:[%s3 + $0x2a8] sm:$0xff]
  %v1528 = vld [vmem:[%s3 + $0x2b0] sm:$0xff]
  %v1529 = vld [vmem:[%s3 + $0x2b8] sm:$0xff]
  %v1530 = vld [vmem:[%s3 + $0x2c0] sm:$0xff]
  %v1531 = vld [vmem:[%s3 + $0x2c8] sm:$0xff]
  %v1532 = vld [vmem:[%s3 + $0x2d0] sm:$0xff]
  %v1533 = vld [vmem:[%s3 + $0x2d8] sm:$0xff]
  %v1534 = vld [vmem:[%s3 + $0x2e0] sm:$0xff]
  %v1535 = vld [vmem:[%s3 + $0x2e8] sm:$0xff]
  %v1536 = vld [vmem:[%s3 + $0x2f0] sm:$0xff]
  %v1537 = vld [vmem:[%s3 + $0x2f8] sm:$0xff]
  %v1538 = vld [vmem:[%s3 + $0x300] sm:$0xff]
  %v1539 = vld [vmem:[%s3 + $0x308] sm:$0xff]
  %v1540 = vld [vmem:[%s3 + $0x310] sm:$0xff]
  %v1541 = vld [vmem:[%s3 + $0x318] sm:$0xff]
  %v1542 = vld [vmem:[%s3 + $0x320] sm:$0xff]
  %v1543 = vld [vmem:[%s3 + $0x328] sm:$0xff]
  %v1544 = vld [vmem:[%s3 + $0x330] sm:$0xff]
  %v1545 = vld [vmem:[%s3 + $0x338] sm:$0xff]
  %v1546 = vld [vmem:[%s3 + $0x340] sm:$0xff]
  %v1547 = vld [vmem:[%s3 + $0x348] sm:$0xff]
  %v1548 = vld [vmem:[%s3 + $0x350] sm:$0xff]
  %v1549 = vld [vmem:[%s3 + $0x358] sm:$0xff]
  %v1550 = vld [vmem:[%s3 + $0x360] sm:$0xff]
  %v1551 = vld [vmem:[%s3 + $0x368] sm:$0xff]
  %v1552 = vld [vmem:[%s3 + $0x370] sm:$0xff]
  %v1553 = vld [vmem:[%s3 + $0x378] sm:$0xff]
  %v1554 = vld [vmem:[%s3 + $0x380] sm:$0xff]
  %v1555 = vld [vmem:[%s3 + $0x388] sm:$0xff]
  %v1556 = vld [vmem:[%s3 + $0x390] sm:$0xff]
  %v1557 = vld [vmem:[%s3 + $0x398] sm:$0xff]
  %v1558 = vld [vmem:[%s3 + $0x3a0] sm:$0xff]
  %v1559 = vld [vmem:[%s3 + $0x3a8] sm:$0xff]
  %v1560 = vld [vmem:[%s3 + $0x3b0] sm:$0xff]
  %v1561 = vld [vmem:[%s3 + $0x3b8] sm:$0xff]
  %vm1562 = vcmask 785408
  %v1564 = vsel %vm1562, %v1431, 0
  %v1567 = vsel %vm1562, %v1432, 0
  %v1570 = vsel %vm1562, %v1433, 0
  %v1573 = vsel %vm1562, %v1434, 0
  %v1576 = vsel %vm1562, %v1435, 0
  %v1579 = vsel %vm1562, %v1436, 0
  %v1582 = vsel %vm1562, %v1437, 0
  %v1585 = vsel %vm1562, %v1438, 0
  %1587 = vmatpush.msra.mxu0 0.0
  %1588 = vmatpush.msra.mxu0 0.0
  %1589 = vmatpush.msra.mxu0 0.0
  %1590 = vmatpush.msra.mxu0 0.0
  %1591 = vmatpush.msra.mxu0 %v1465
  %1592 = vmatpush.msra.mxu0 %v1464
  %1593 = vmatpush.msra.mxu0 %v1463
  %1594 = vmatpush.msra.mxu0 %v1462
  %1595 = vmatpush.msra.mxu0 %v1461
  %1596 = vmatpush.msra.mxu0 %v1460
  %1597 = vmatpush.msra.mxu0 %v1459
  %1598 = vmatpush.msra.mxu0 %v1458
  %1599 = vmatpush.msra.mxu0 %v1457
  %1600 = vmatpush.msra.mxu0 %v1456
  %1601 = vmatpush.msra.mxu0 %v1455
  %1602 = vmatpush.msra.mxu0 %v1454
  %1603 = vmatmul.f32.gmra.mxu0 %v1564
  %v1604 = vpop.f32.mrf.mxu0
  %v1605 = vadd.f32 0.0, %v1604
  %1606 = vmatmul.f32.gmra.mxu0 %v1567
  %v1607 = vpop.f32.mrf.mxu0
  %v1608 = vadd.f32 0.0, %v1607
  %1609 = vmatmul.f32.gmra.mxu0 %v1570
  %v1610 = vpop.f32.mrf.mxu0
  %v1611 = vadd.f32 0.0, %v1610
  %1612 = vmatmul.f32.gmra.mxu0 %v1573
  %v1613 = vpop.f32.mrf.mxu0
  %v1614 = vadd.f32 0.0, %v1613
  %1615 = vmatmul.f32.gmra.mxu0 %v1576
  %v1616 = vpop.f32.mrf.mxu0
  %v1617 = vadd.f32 0.0, %v1616
  %1618 = vmatmul.f32.gmra.mxu0 %v1579
  %v1619 = vpop.f32.mrf.mxu0
  %v1620 = vadd.f32 0.0, %v1619
  %1621 = vmatmul.f32.gmra.mxu0 %v1582
  %v1622 = vpop.f32.mrf.mxu0
  %v1623 = vadd.f32 0.0, %v1622
  %1624 = vmatmul.f32.gmra.mxu0 %v1585
  %v1625 = vpop.f32.mrf.mxu0
  %v1626 = vadd.f32 0.0, %v1625
  %1627 = vdwg.mxu0
  %v1629 = vsel %vm1562, %v1439, 0
  %v1632 = vsel %vm1562, %v1440, 0
  %1634 = vmatpush.msra.mxu0 0.0
  %1635 = vmatpush.msra.mxu0 0.0
  %1636 = vmatpush.msra.mxu0 0.0
  %1637 = vmatpush.msra.mxu0 0.0
  %1638 = vmatpush.msra.mxu0 %v1489
  %1639 = vmatpush.msra.mxu0 %v1488
  %1640 = vmatpush.msra.mxu0 %v1487
  %1641 = vmatpush.msra.mxu0 %v1486
  %1642 = vmatpush.msra.mxu0 %v1485
  %1643 = vmatpush.msra.mxu0 %v1484
  %1644 = vmatpush.msra.mxu0 %v1483
  %1645 = vmatpush.msra.mxu0 %v1482
  %1646 = vmatpush.msra.mxu0 %v1481
  %1647 = vmatpush.msra.mxu0 %v1480
  %1648 = vmatpush.msra.mxu0 %v1479
  %1649 = vmatpush.msra.mxu0 %v1478
  %1650 = vmatmul.f32.gmra.mxu0 %v1570
  %v1651 = vpop.f32.mrf.mxu0
  %v1652 = vadd.f32 0.0, %v1651
  %1653 = vmatmul.f32.gmra.mxu0 %v1573
  %v1654 = vpop.f32.mrf.mxu0
  %v1655 = vadd.f32 0.0, %v1654
  %1656 = vmatmul.f32.gmra.mxu0 %v1576
  %v1657 = vpop.f32.mrf.mxu0
  %v1658 = vadd.f32 0.0, %v1657
  %1659 = vmatmul.f32.gmra.mxu0 %v1579
  %v1660 = vpop.f32.mrf.mxu0
  %v1661 = vadd.f32 0.0, %v1660
  %1662 = vmatmul.f32.gmra.mxu0 %v1582
  %v1663 = vpop.f32.mrf.mxu0
  %v1664 = vadd.f32 0.0, %v1663
  %1665 = vmatmul.f32.gmra.mxu0 %v1585
  %v1666 = vpop.f32.mrf.mxu0
  %v1667 = vadd.f32 0.0, %v1666
  %1668 = vmatmul.f32.gmra.mxu0 %v1629
  %v1669 = vpop.f32.mrf.mxu0
  %v1670 = vadd.f32 0.0, %v1669
  %1671 = vmatmul.f32.gmra.mxu0 %v1632
  %v1672 = vpop.f32.mrf.mxu0
  %v1673 = vadd.f32 0.0, %v1672
  %1674 = vdwg.mxu0
  %v1676 = vsel %vm1562, %v1441, 0
  %1678 = vmatpush.msra.mxu0 0.0
  %1679 = vmatpush.msra.mxu0 0.0
  %1680 = vmatpush.msra.mxu0 0.0
  %1681 = vmatpush.msra.mxu0 0.0
  %1682 = vmatpush.msra.mxu0 %v1501
  %1683 = vmatpush.msra.mxu0 %v1500
  %1684 = vmatpush.msra.mxu0 %v1499
  %1685 = vmatpush.msra.mxu0 %v1498
  %1686 = vmatpush.msra.mxu0 %v1497
  %1687 = vmatpush.msra.mxu0 %v1496
  %1688 = vmatpush.msra.mxu0 %v1495
  %1689 = vmatpush.msra.mxu0 %v1494
  %1690 = vmatpush.msra.mxu0 %v1493
  %1691 = vmatpush.msra.mxu0 %v1492
  %1692 = vmatpush.msra.mxu0 %v1491
  %1693 = vmatpush.msra.mxu0 %v1490
  %1694 = vmatmul.f32.gmra.mxu0 %v1573
  %v1695 = vpop.f32.mrf.mxu0
  %v1696 = vadd.f32 0.0, %v1695
  %1697 = vmatmul.f32.gmra.mxu0 %v1576
  %v1698 = vpop.f32.mrf.mxu0
  %v1699 = vadd.f32 0.0, %v1698
  %1700 = vmatmul.f32.gmra.mxu0 %v1579
  %v1701 = vpop.f32.mrf.mxu0
  %v1702 = vadd.f32 0.0, %v1701
  %1703 = vmatmul.f32.gmra.mxu0 %v1582
  %v1704 = vpop.f32.mrf.mxu0
  %v1705 = vadd.f32 0.0, %v1704
  %1706 = vmatmul.f32.gmra.mxu0 %v1585
  %v1707 = vpop.f32.mrf.mxu0
  %v1708 = vadd.f32 0.0, %v1707
  %1709 = vmatmul.f32.gmra.mxu0 %v1629
  %v1710 = vpop.f32.mrf.mxu0
  %v1711 = vadd.f32 0.0, %v1710
  %1712 = vmatmul.f32.gmra.mxu0 %v1632
  %v1713 = vpop.f32.mrf.mxu0
  %v1714 = vadd.f32 0.0, %v1713
  %1715 = vmatmul.f32.gmra.mxu0 %v1676
  %v1716 = vpop.f32.mrf.mxu0
  %v1717 = vadd.f32 0.0, %v1716
  %1718 = vdwg.mxu0
  %v1720 = vsel %vm1562, %v1430, 0
  %1722 = vmatpush.msra.mxu0 0.0
  %1723 = vmatpush.msra.mxu0 0.0
  %1724 = vmatpush.msra.mxu0 0.0
  %1725 = vmatpush.msra.mxu0 0.0
  %1726 = vmatpush.msra.mxu0 %v1453
  %1727 = vmatpush.msra.mxu0 %v1452
  %1728 = vmatpush.msra.mxu0 %v1451
  %1729 = vmatpush.msra.mxu0 %v1450
  %1730 = vmatpush.msra.mxu0 %v1449
  %1731 = vmatpush.msra.mxu0 %v1448
  %1732 = vmatpush.msra.mxu0 %v1447
  %1733 = vmatpush.msra.mxu0 %v1446
  %1734 = vmatpush.msra.mxu0 %v1445
  %1735 = vmatpush.msra.mxu0 %v1444
  %1736 = vmatpush.msra.mxu0 %v1443
  %1737 = vmatpush.msra.mxu0 %v1442
  %1738 = vmatmul.f32.gmra.mxu0 %v1720
  %v1739 = vpop.f32.mrf.mxu0
  %v1740 = vadd.f32 %v1605, %v1739
  %1741 = vmatmul.f32.gmra.mxu0 %v1564
  %v1742 = vpop.f32.mrf.mxu0
  %v1743 = vadd.f32 %v1608, %v1742
  %1744 = vmatmul.f32.gmra.mxu0 %v1567
  %v1745 = vpop.f32.mrf.mxu0
  %v1746 = vadd.f32 %v1611, %v1745
  %1747 = vmatmul.f32.gmra.mxu0 %v1570
  %v1748 = vpop.f32.mrf.mxu0
  %v1749 = vadd.f32 %v1614, %v1748
  %1750 = vmatmul.f32.gmra.mxu0 %v1573
  %v1751 = vpop.f32.mrf.mxu0
  %v1752 = vadd.f32 %v1617, %v1751
  %1753 = vmatmul.f32.gmra.mxu0 %v1576
  %v1754 = vpop.f32.mrf.mxu0
  %v1755 = vadd.f32 %v1620, %v1754
  %1756 = vmatmul.f32.gmra.mxu0 %v1579
  %v1757 = vpop.f32.mrf.mxu0
  %v1758 = vadd.f32 %v1623, %v1757
  %1759 = vmatmul.f32.gmra.mxu0 %v1582
  %v1760 = vpop.f32.mrf.mxu0
  %v1761 = vadd.f32 %v1626, %v1760
  %1762 = vdwg.mxu0
  %1763 = vmatpush.msra.mxu0 0.0
  %1764 = vmatpush.msra.mxu0 0.0
  %1765 = vmatpush.msra.mxu0 0.0
  %1766 = vmatpush.msra.mxu0 0.0
  %1767 = vmatpush.msra.mxu0 %v1477
  %1768 = vmatpush.msra.mxu0 %v1476
  %1769 = vmatpush.msra.mxu0 %v1475
  %1770 = vmatpush.msra.mxu0 %v1474
  %1771 = vmatpush.msra.mxu0 %v1473
  %1772 = vmatpush.msra.mxu0 %v1472
  %1773 = vmatpush.msra.mxu0 %v1471
  %1774 = vmatpush.msra.mxu0 %v1470
  %1775 = vmatpush.msra.mxu0 %v1469
  %1776 = vmatpush.msra.mxu0 %v1468
  %1777 = vmatpush.msra.mxu0 %v1467
  %1778 = vmatpush.msra.mxu0 %v1466
  %1779 = vmatmul.f32.gmra.mxu0 %v1567
  %v1780 = vpop.f32.mrf.mxu0
  %v1781 = vadd.f32 %v1652, %v1780
  %1782 = vmatmul.f32.gmra.mxu0 %v1570
  %v1783 = vpop.f32.mrf.mxu0
  %v1784 = vadd.f32 %v1655, %v1783
  %1785 = vmatmul.f32.gmra.mxu0 %v1573
  %v1786 = vpop.f32.mrf.mxu0
  %v1787 = vadd.f32 %v1658, %v1786
  %1788 = vmatmul.f32.gmra.mxu0 %v1576
  %v1789 = vpop.f32.mrf.mxu0
  %v1790 = vadd.f32 %v1661, %v1789
  %1791 = vmatmul.f32.gmra.mxu0 %v1579
  %v1792 = vpop.f32.mrf.mxu0
  %v1793 = vadd.f32 %v1664, %v1792
  %1794 = vmatmul.f32.gmra.mxu0 %v1582
  %v1795 = vpop.f32.mrf.mxu0
  %v1796 = vadd.f32 %v1667, %v1795
  %1797 = vmatmul.f32.gmra.mxu0 %v1585
  %v1798 = vpop.f32.mrf.mxu0
  %v1799 = vadd.f32 %v1670, %v1798
  %1800 = vmatmul.f32.gmra.mxu0 %v1629
  %v1801 = vpop.f32.mrf.mxu0
  %v1802 = vadd.f32 %v1673, %v1801
  %1803 = vdwg.mxu0
  %v1804 = vadd.f32 %v1740, %v1781
  %v1805 = vadd.f32 %v1743, %v1784
  %v1806 = vadd.f32 %v1746, %v1787
  %v1807 = vadd.f32 %v1749, %v1790
  %v1808 = vadd.f32 %v1752, %v1793
  %v1809 = vadd.f32 %v1755, %v1796
  %v1810 = vadd.f32 %v1758, %v1799
  %v1811 = vadd.f32 %v1761, %v1802
  %v1812 = vadd.f32 %v1804, %v1696
  %v1813 = vadd.f32 %v1805, %v1699
  %v1814 = vadd.f32 %v1806, %v1702
  %v1815 = vadd.f32 %v1807, %v1705
  %v1816 = vadd.f32 %v1808, %v1708
  %v1817 = vadd.f32 %v1809, %v1711
  %v1818 = vadd.f32 %v1810, %v1714
  %v1819 = vadd.f32 %v1811, %v1717
  %1820 = vmatpush.msra.mxu0 0.0
  %1821 = vmatpush.msra.mxu0 0.0
  %1822 = vmatpush.msra.mxu0 0.0
  %1823 = vmatpush.msra.mxu0 0.0
  %1824 = vmatpush.msra.mxu0 %v1525
  %1825 = vmatpush.msra.mxu0 %v1524
  %1826 = vmatpush.msra.mxu0 %v1523
  %1827 = vmatpush.msra.mxu0 %v1522
  %1828 = vmatpush.msra.mxu0 %v1521
  %1829 = vmatpush.msra.mxu0 %v1520
  %1830 = vmatpush.msra.mxu0 %v1519
  %1831 = vmatpush.msra.mxu0 %v1518
  %1832 = vmatpush.msra.mxu0 %v1517
  %1833 = vmatpush.msra.mxu0 %v1516
  %1834 = vmatpush.msra.mxu0 %v1515
  %1835 = vmatpush.msra.mxu0 %v1514
  %1836 = vmatmul.f32.gmra.mxu0 %v1564
  %v1837 = vpop.f32.mrf.mxu0
  %v1838 = vadd.f32 0.0, %v1837
  %1839 = vmatmul.f32.gmra.mxu0 %v1567
  %v1840 = vpop.f32.mrf.mxu0
  %v1841 = vadd.f32 0.0, %v1840
  %1842 = vmatmul.f32.gmra.mxu0 %v1570
  %v1843 = vpop.f32.mrf.mxu0
  %v1844 = vadd.f32 0.0, %v1843
  %1845 = vmatmul.f32.gmra.mxu0 %v1573
  %v1846 = vpop.f32.mrf.mxu0
  %v1847 = vadd.f32 0.0, %v1846
  %1848 = vmatmul.f32.gmra.mxu0 %v1576
  %v1849 = vpop.f32.mrf.mxu0
  %v1850 = vadd.f32 0.0, %v1849
  %1851 = vmatmul.f32.gmra.mxu0 %v1579
  %v1852 = vpop.f32.mrf.mxu0
  %v1853 = vadd.f32 0.0, %v1852
  %1854 = vmatmul.f32.gmra.mxu0 %v1582
  %v1855 = vpop.f32.mrf.mxu0
  %v1856 = vadd.f32 0.0, %v1855
  %1857 = vmatmul.f32.gmra.mxu0 %v1585
  %v1858 = vpop.f32.mrf.mxu0
  %v1859 = vadd.f32 0.0, %v1858
  %1860 = vdwg.mxu0
  %1861 = vmatpush.msra.mxu0 0.0
  %1862 = vmatpush.msra.mxu0 0.0
  %1863 = vmatpush.msra.mxu0 0.0
  %1864 = vmatpush.msra.mxu0 0.0
  %1865 = vmatpush.msra.mxu0 %v1549
  %1866 = vmatpush.msra.mxu0 %v1548
  %1867 = vmatpush.msra.mxu0 %v1547
  %1868 = vmatpush.msra.mxu0 %v1546
  %1869 = vmatpush.msra.mxu0 %v1545
  %1870 = vmatpush.msra.mxu0 %v1544
  %1871 = vmatpush.msra.mxu0 %v1543
  %1872 = vmatpush.msra.mxu0 %v1542
  %1873 = vmatpush.msra.mxu0 %v1541
  %1874 = vmatpush.msra.mxu0 %v1540
  %1875 = vmatpush.msra.mxu0 %v1539
  %1876 = vmatpush.msra.mxu0 %v1538
  %1877 = vmatmul.f32.gmra.mxu0 %v1570
  %v1878 = vpop.f32.mrf.mxu0
  %v1879 = vadd.f32 0.0, %v1878
  %1880 = vmatmul.f32.gmra.mxu0 %v1573
  %v1881 = vpop.f32.mrf.mxu0
  %v1882 = vadd.f32 0.0, %v1881
  %1883 = vmatmul.f32.gmra.mxu0 %v1576
  %v1884 = vpop.f32.mrf.mxu0
  %v1885 = vadd.f32 0.0, %v1884
  %1886 = vmatmul.f32.gmra.mxu0 %v1579
  %v1887 = vpop.f32.mrf.mxu0
  %v1888 = vadd.f32 0.0, %v1887
  %1889 = vmatmul.f32.gmra.mxu0 %v1582
  %v1890 = vpop.f32.mrf.mxu0
  %v1891 = vadd.f32 0.0, %v1890
  %1892 = vmatmul.f32.gmra.mxu0 %v1585
  %v1893 = vpop.f32.mrf.mxu0
  %v1894 = vadd.f32 0.0, %v1893
  %1895 = vmatmul.f32.gmra.mxu0 %v1629
  %v1896 = vpop.f32.mrf.mxu0
  %v1897 = vadd.f32 0.0, %v1896
  %1898 = vmatmul.f32.gmra.mxu0 %v1632
  %v1899 = vpop.f32.mrf.mxu0
  %v1900 = vadd.f32 0.0, %v1899
  %1901 = vdwg.mxu0
  %1902 = vmatpush.msra.mxu0 0.0
  %1903 = vmatpush.msra.mxu0 0.0
  %1904 = vmatpush.msra.mxu0 0.0
  %1905 = vmatpush.msra.mxu0 0.0
  %1906 = vmatpush.msra.mxu0 %v1561
  %1907 = vmatpush.msra.mxu0 %v1560
  %1908 = vmatpush.msra.mxu0 %v1559
  %1909 = vmatpush.msra.mxu0 %v1558
  %1910 = vmatpush.msra.mxu0 %v1557
  %1911 = vmatpush.msra.mxu0 %v1556
  %1912 = vmatpush.msra.mxu0 %v1555
  %1913 = vmatpush.msra.mxu0 %v1554
  %1914 = vmatpush.msra.mxu0 %v1553
  %1915 = vmatpush.msra.mxu0 %v1552
  %1916 = vmatpush.msra.mxu0 %v1551
  %1917 = vmatpush.msra.mxu0 %v1550
  %1918 = vmatmul.f32.gmra.mxu0 %v1573
  %v1919 = vpop.f32.mrf.mxu0
  %v1920 = vadd.f32 0.0, %v1919
  %1921 = vmatmul.f32.gmra.mxu0 %v1576
  %v1922 = vpop.f32.mrf.mxu0
  %v1923 = vadd.f32 0.0, %v1922
  %1924 = vmatmul.f32.gmra.mxu0 %v1579
  %v1925 = vpop.f32.mrf.mxu0
  %v1926 = vadd.f32 0.0, %v1925
  %1927 = vmatmul.f32.gmra.mxu0 %v1582
  %v1928 = vpop.f32.mrf.mxu0
  %v1929 = vadd.f32 0.0, %v1928
  %1930 = vmatmul.f32.gmra.mxu0 %v1585
  %v1931 = vpop.f32.mrf.mxu0
  %v1932 = vadd.f32 0.0, %v1931
  %1933 = vmatmul.f32.gmra.mxu0 %v1629
  %v1934 = vpop.f32.mrf.mxu0
  %v1935 = vadd.f32 0.0, %v1934
  %1936 = vmatmul.f32.gmra.mxu0 %v1632
  %v1937 = vpop.f32.mrf.mxu0
  %v1938 = vadd.f32 0.0, %v1937
  %1939 = vmatmul.f32.gmra.mxu0 %v1676
  %v1940 = vpop.f32.mrf.mxu0
  %v1941 = vadd.f32 0.0, %v1940
  %1942 = vdwg.mxu0
  %1943 = vmatpush.msra.mxu0 0.0
  %1944 = vmatpush.msra.mxu0 0.0
  %1945 = vmatpush.msra.mxu0 0.0
  %1946 = vmatpush.msra.mxu0 0.0
  %1947 = vmatpush.msra.mxu0 %v1513
  %1948 = vmatpush.msra.mxu0 %v1512
  %1949 = vmatpush.msra.mxu0 %v1511
  %1950 = vmatpush.msra.mxu0 %v1510
  %1951 = vmatpush.msra.mxu0 %v1509
  %1952 = vmatpush.msra.mxu0 %v1508
  %1953 = vmatpush.msra.mxu0 %v1507
  %1954 = vmatpush.msra.mxu0 %v1506
  %1955 = vmatpush.msra.mxu0 %v1505
  %1956 = vmatpush.msra.mxu0 %v1504
  %1957 = vmatpush.msra.mxu0 %v1503
  %1958 = vmatpush.msra.mxu0 %v1502
  %1959 = vmatmul.f32.gmra.mxu0 %v1720
  %v1960 = vpop.f32.mrf.mxu0
  %v1961 = vadd.f32 %v1838, %v1960
  %1962 = vmatmul.f32.gmra.mxu0 %v1564
  %v1963 = vpop.f32.mrf.mxu0
  %v1964 = vadd.f32 %v1841, %v1963
  %1965 = vmatmul.f32.gmra.mxu0 %v1567
  %v1966 = vpop.f32.mrf.mxu0
  %v1967 = vadd.f32 %v1844, %v1966
  %1968 = vmatmul.f32.gmra.mxu0 %v1570
  %v1969 = vpop.f32.mrf.mxu0
  %v1970 = vadd.f32 %v1847, %v1969
  %1971 = vmatmul.f32.gmra.mxu0 %v1573
  %v1972 = vpop.f32.mrf.mxu0
  %v1973 = vadd.f32 %v1850, %v1972
  %1974 = vmatmul.f32.gmra.mxu0 %v1576
  %v1975 = vpop.f32.mrf.mxu0
  %v1976 = vadd.f32 %v1853, %v1975
  %1977 = vmatmul.f32.gmra.mxu0 %v1579
  %v1978 = vpop.f32.mrf.mxu0
  %v1979 = vadd.f32 %v1856, %v1978
  %1980 = vmatmul.f32.gmra.mxu0 %v1582
  %v1981 = vpop.f32.mrf.mxu0
  %v1982 = vadd.f32 %v1859, %v1981
  %1983 = vdwg.mxu0
  %1984 = vmatpush.msra.mxu0 0.0
  %1985 = vmatpush.msra.mxu0 0.0
  %1986 = vmatpush.msra.mxu0 0.0
  %1987 = vmatpush.msra.mxu0 0.0
  %1988 = vmatpush.msra.mxu0 %v1537
  %1989 = vmatpush.msra.mxu0 %v1536
  %1990 = vmatpush.msra.mxu0 %v1535
  %1991 = vmatpush.msra.mxu0 %v1534
  %1992 = vmatpush.msra.mxu0 %v1533
  %1993 = vmatpush.msra.mxu0 %v1532
  %1994 = vmatpush.msra.mxu0 %v1531
  %1995 = vmatpush.msra.mxu0 %v1530
  %1996 = vmatpush.msra.mxu0 %v1529
  %1997 = vmatpush.msra.mxu0 %v1528
  %1998 = vmatpush.msra.mxu0 %v1527
  %1999 = vmatpush.msra.mxu0 %v1526
  %2000 = vmatmul.f32.gmra.mxu0 %v1567
  %v2001 = vpop.f32.mrf.mxu0
  %v2002 = vadd.f32 %v1879, %v2001
  %2003 = vmatmul.f32.gmra.mxu0 %v1570
  %v2004 = vpop.f32.mrf.mxu0
  %v2005 = vadd.f32 %v1882, %v2004
  %2006 = vmatmul.f32.gmra.mxu0 %v1573
  %v2007 = vpop.f32.mrf.mxu0
  %v2008 = vadd.f32 %v1885, %v2007
  %2009 = vmatmul.f32.gmra.mxu0 %v1576
  %v2010 = vpop.f32.mrf.mxu0
  %v2011 = vadd.f32 %v1888, %v2010
  %2012 = vmatmul.f32.gmra.mxu0 %v1579
  %v2013 = vpop.f32.mrf.mxu0
  %v2014 = vadd.f32 %v1891, %v2013
  %2015 = vmatmul.f32.gmra.mxu0 %v1582
  %v2016 = vpop.f32.mrf.mxu0
  %v2017 = vadd.f32 %v1894, %v2016
  %2018 = vmatmul.f32.gmra.mxu0 %v1585
  %v2019 = vpop.f32.mrf.mxu0
  %v2020 = vadd.f32 %v1897, %v2019
  %2021 = vmatmul.f32.gmra.mxu0 %v1629
  %v2022 = vpop.f32.mrf.mxu0
  %v2023 = vadd.f32 %v1900, %v2022
  %2024 = vdwg.mxu0
  %v2025 = vadd.f32 %v1961, %v2002
  %v2026 = vadd.f32 %v1964, %v2005
  %v2027 = vadd.f32 %v1967, %v2008
  %v2028 = vadd.f32 %v1970, %v2011
  %v2029 = vadd.f32 %v1973, %v2014
  %v2030 = vadd.f32 %v1976, %v2017
  %v2031 = vadd.f32 %v1979, %v2020
  %v2032 = vadd.f32 %v1982, %v2023
  %v2033 = vadd.f32 %v2025, %v1920
  %v2034 = vadd.f32 %v2026, %v1923
  %v2035 = vadd.f32 %v2027, %v1926
  %v2036 = vadd.f32 %v2028, %v1929
  %v2037 = vadd.f32 %v2029, %v1932
  %v2038 = vadd.f32 %v2030, %v1935
  %v2039 = vadd.f32 %v2031, %v1938
  %v2040 = vadd.f32 %v2032, %v1941
  %v2041 = vmax.f32 %v1812, %v2033
  %v2042 = vmax.f32 %v1813, %v2034
  %v2043 = vmax.f32 %v1814, %v2035
  %v2044 = vmax.f32 %v1815, %v2036
  %v2045 = vmax.f32 %v1816, %v2037
  %v2046 = vmax.f32 %v1817, %v2038
  %v2047 = vmax.f32 %v1818, %v2039
  %v2048 = vmax.f32 %v1819, %v2040
  %v2049 = vld [vmem:[%s4] sm:$0x1]
  %v2051 = vperm.slane %v2049, 0
  %v2053 = vadd.f32 %v2041, %v2051
  %v2054 = vadd.f32 %v2042, %v2051
  %v2055 = vadd.f32 %v2043, %v2051
  %v2056 = vadd.f32 %v2044, %v2051
  %v2057 = vadd.f32 %v2045, %v2051
  %v2058 = vadd.f32 %v2046, %v2051
  %v2059 = vadd.f32 %v2047, %v2051
  %v2060 = vadd.f32 %v2048, %v2051
  %v2061 = vmax.f32 %v2053, 0.0
  %v2062 = vmax.f32 %v2054, 0.0
  %v2063 = vmax.f32 %v2055, 0.0
  %v2064 = vmax.f32 %v2056, 0.0
  %v2065 = vmax.f32 %v2057, 0.0
  %v2066 = vmax.f32 %v2058, 0.0
  %v2067 = vmax.f32 %v2059, 0.0
  %v2068 = vmax.f32 %v2060, 0.0
  %v2069 = vmax.f32 %v2061, %v2062
  %v2070 = vmax.f32 %v2063, %v2064
  %v2071 = vmax.f32 %v2065, %v2066
  %v2072 = vmax.f32 %v2067, %v2068
  %2074 = vrot.lane.b32.xlu0 %v2070, 64
  %v2075 = vpop.permute.xlu0 %2074
  %2078 = vrot.lane.b32.xlu0 %v2072, 64
  %v2079 = vpop.permute.xlu0 %2078
  %vm2081 = vcmask 523264
  %v2082 = vsel %vm2081, %v2069, %v2075
  %v2083 = vsel %vm2081, %v2071, %v2079
  %v2084 = vld [vmem:[%s5] sm:$0xff]
  %v2085 = vld [vmem:[%s5 + $0x8] sm:$0xff]
  %v2086 = vld [vmem:[%s5 + $0x10] sm:$0xff]
  %v2087 = vld [vmem:[%s5 + $0x18] sm:$0xff]
  %v2088 = vld [vmem:[%s5 + $0x20] sm:$0xff]
  %v2089 = vld [vmem:[%s5 + $0x28] sm:$0xff]
  %v2090 = vld [vmem:[%s5 + $0x30] sm:$0xff]
  %v2091 = vld [vmem:[%s5 + $0x38] sm:$0xff]
  %v2092 = vld [vmem:[%s5 + $0x40] sm:$0xff]
  %v2093 = vld [vmem:[%s5 + $0x48] sm:$0xff]
  %v2094 = vld [vmem:[%s5 + $0x50] sm:$0xff]
  %v2095 = vld [vmem:[%s5 + $0x58] sm:$0xff]
  %v2096 = vld [vmem:[%s5 + $0x60] sm:$0xff]
  %v2097 = vld [vmem:[%s5 + $0x68] sm:$0xff]
  %v2098 = vld [vmem:[%s5 + $0x70] sm:$0xff]
  %v2099 = vld [vmem:[%s5 + $0x78] sm:$0xff]
  %v2100 = vld [vmem:[%s5 + $0x80] sm:$0xff]
  %v2101 = vld [vmem:[%s5 + $0x88] sm:$0xff]
  %v2102 = vld [vmem:[%s5 + $0x90] sm:$0xff]
  %v2103 = vld [vmem:[%s5 + $0x98] sm:$0xff]
  %v2104 = vld [vmem:[%s5 + $0xa0] sm:$0xff]
  %v2105 = vld [vmem:[%s5 + $0xa8] sm:$0xff]
  %v2106 = vld [vmem:[%s5 + $0xb0] sm:$0xff]
  %v2107 = vld [vmem:[%s5 + $0xb8] sm:$0xff]
  %v2108 = vld [vmem:[%s5 + $0xc0] sm:$0xff]
  %v2109 = vld [vmem:[%s5 + $0xc8] sm:$0xff]
  %v2110 = vld [vmem:[%s5 + $0xd0] sm:$0xff]
  %v2111 = vld [vmem:[%s5 + $0xd8] sm:$0xff]
  %v2112 = vld [vmem:[%s5 + $0xe0] sm:$0xff]
  %v2113 = vld [vmem:[%s5 + $0xe8] sm:$0xff]
  %v2114 = vld [vmem:[%s5 + $0xf0] sm:$0xff]
  %v2115 = vld [vmem:[%s5 + $0xf8] sm:$0xff]
  %v2116 = vld [vmem:[%s6] sm:$0x1]
  %v2118 = vperm.slane %v2116, 0
  %2120 = vmatpush.msra.mxu0 %v2099
  %2121 = vmatpush.msra.mxu0 %v2098
  %2122 = vmatpush.msra.mxu0 %v2097
  %2123 = vmatpush.msra.mxu0 %v2096
  %2124 = vmatpush.msra.mxu0 %v2095
  %2125 = vmatpush.msra.mxu0 %v2094
  %2126 = vmatpush.msra.mxu0 %v2093
  %2127 = vmatpush.msra.mxu0 %v2092
  %2128 = vmatpush.msra.mxu0 %v2091
  %2129 = vmatpush.msra.mxu0 %v2090
  %2130 = vmatpush.msra.mxu0 %v2089
  %2131 = vmatpush.msra.mxu0 %v2088
  %2132 = vmatpush.msra.mxu0 %v2087
  %2133 = vmatpush.msra.mxu0 %v2086
  %2134 = vmatpush.msra.mxu0 %v2085
  %2135 = vmatpush.msra.mxu0 %v2084
  %2136 = vmatmul.f32.gmra.mxu0 %v2082
  %v2137 = vpop.f32.mrf.mxu0
  %v2138 = vadd.f32 %v2118, %v2137
  %2139 = vdwg.mxu0
  %2140 = vmatpush.msra.mxu0 %v2115
  %2141 = vmatpush.msra.mxu0 %v2114
  %2142 = vmatpush.msra.mxu0 %v2113
  %2143 = vmatpush.msra.mxu0 %v2112
  %2144 = vmatpush.msra.mxu0 %v2111
  %2145 = vmatpush.msra.mxu0 %v2110
  %2146 = vmatpush.msra.mxu0 %v2109
  %2147 = vmatpush.msra.mxu0 %v2108
  %2148 = vmatpush.msra.mxu0 %v2107
  %2149 = vmatpush.msra.mxu0 %v2106
  %2150 = vmatpush.msra.mxu0 %v2105
  %2151 = vmatpush.msra.mxu0 %v2104
  %2152 = vmatpush.msra.mxu0 %v2103
  %2153 = vmatpush.msra.mxu0 %v2102
  %2154 = vmatpush.msra.mxu0 %v2101
  %2155 = vmatpush.msra.mxu0 %v2100
  %2156 = vmatmul.f32.gmra.mxu0 %v2083
  %v2157 = vpop.f32.mrf.mxu0
  %v2158 = vadd.f32 %v2138, %v2157
  %2159 = vdwg.mxu0
  %v2160 = vmax.f32 %v2158, 0.0
  %v2161 = vld [vmem:[%s7] sm:$0xff]
  %v2162 = vld [vmem:[%s7 + $0x8] sm:$0xff]
  %v2163 = vld [vmem:[%s7 + $0x10] sm:$0xff]
  %v2164 = vld [vmem:[%s7 + $0x18] sm:$0xff]
  %v2165 = vld [vmem:[%s7 + $0x20] sm:$0xff]
  %v2166 = vld [vmem:[%s7 + $0x28] sm:$0xff]
  %v2167 = vld [vmem:[%s7 + $0x30] sm:$0xff]
  %v2168 = vld [vmem:[%s7 + $0x38] sm:$0xff]
  %v2169 = vld [vmem:[%s7 + $0x40] sm:$0xff]
  %v2170 = vld [vmem:[%s7 + $0x48] sm:$0xff]
  %v2171 = vld [vmem:[%s7 + $0x50] sm:$0xff]
  %v2172 = vld [vmem:[%s7 + $0x58] sm:$0xff]
  %v2173 = vld [vmem:[%s7 + $0x60] sm:$0xff]
  %v2174 = vld [vmem:[%s7 + $0x68] sm:$0xff]
  %v2175 = vld [vmem:[%s7 + $0x70] sm:$0xff]
  %v2176 = vld [vmem:[%s8] sm:$0x1]
  %v2178 = vperm.slane %v2176, 0
  %vm2180 = vcmask 982016
  %v2182 = vsel %vm2180, %v2160, 0
  %2184 = vmatpush.msra.mxu0 0.0
  %2185 = vmatpush.msra.mxu0 %v2175
  %2186 = vmatpush.msra.mxu0 %v2174
  %2187 = vmatpush.msra.mxu0 %v2173
  %2188 = vmatpush.msra.mxu0 %v2172
  %2189 = vmatpush.msra.mxu0 %v2171
  %2190 = vmatpush.msra.mxu0 %v2170
  %2191 = vmatpush.msra.mxu0 %v2169
  %2192 = vmatpush.msra.mxu0 %v2168
  %2193 = vmatpush.msra.mxu0 %v2167
  %2194 = vmatpush.msra.mxu0 %v2166
  %2195 = vmatpush.msra.mxu0 %v2165
  %2196 = vmatpush.msra.mxu0 %v2164
  %2197 = vmatpush.msra.mxu0 %v2163
  %2198 = vmatpush.msra.mxu0 %v2162
  %2199 = vmatpush.msra.mxu0 %v2161
  %2200 = vmatmul.f32.gmra.mxu0 %v2182
  %v2201 = vpop.f32.mrf.mxu0
  %v2202 = vadd.f32 %v2178, %v2201
  %2203 = vdwg.mxu0
  %v2204 = vmax.f32 %v2202, 0.0
  %v2205 = vld [vmem:[%s9] sm:$0xff]
  %v2206 = vld [vmem:[%s9 + $0x8] sm:$0xff]
  %v2207 = vld [vmem:[%s9 + $0x10] sm:$0xff]
  %v2208 = vld [vmem:[%s9 + $0x18] sm:$0xff]
  %v2209 = vld [vmem:[%s9 + $0x20] sm:$0xff]
  %v2210 = vld [vmem:[%s9 + $0x28] sm:$0xff]
  %v2211 = vld [vmem:[%s9 + $0x30] sm:$0xff]
  %v2212 = vld [vmem:[%s9 + $0x38] sm:$0xf]
  %v2213 = vld [vmem:[%s10] sm:$0x1]
  %v2215 = vperm.slane %v2213, 0
  %vm2217 = vcmask 490496
  %v2219 = vsel %vm2217, %v2204, 0
  %v2222 = vsel %vm143, %v2212, 0
  %2224 = vmatpush.msra.mxu0 0.0
  %2225 = vmatpush.msra.mxu0 0.0
  %2226 = vmatpush.msra.mxu0 0.0
  %2227 = vmatpush.msra.mxu0 0.0
  %2228 = vmatpush.msra.mxu0 0.0
  %2229 = vmatpush.msra.mxu0 0.0
  %2230 = vmatpush.msra.mxu0 0.0
  %2231 = vmatpush.msra.mxu0 0.0
  %2232 = vmatpush.msra.mxu0 %v2222
  %2233 = vmatpush.msra.mxu0 %v2211
  %2234 = vmatpush.msra.mxu0 %v2210
  %2235 = vmatpush.msra.mxu0 %v2209
  %2236 = vmatpush.msra.mxu0 %v2208
  %2237 = vmatpush.msra.mxu0 %v2207
  %2238 = vmatpush.msra.mxu0 %v2206
  %2239 = vmatpush.msra.mxu0 %v2205
  %2240 = vmatmul.f32.gmra.mxu0 %v2219
  %v2241 = vpop.f32.mrf.mxu0
  %v2242 = vadd.f32 %v2215, %v2241
  %2243 = vdwg.mxu0
  %2244 = vst [vmem:[%s11] sm:$0xff] %v2242
  // Predicated region
  $region46: #{network_forward.1} parent=0 // pred_check
    _
  $region47: #{network_forward.1} parent=0 // pred_check_branch
    %2246 = sbr.rel (0) target = $region49
  $region48: #{network_forward.1} parent=0 // pred_region
    _
  $region49: #{network_forward.1} parent=0 // pred_fallthru
    _
  // Predicated region
  $region50: #{network_forward.1} parent=0 // pred_check
    _
  $region51: #{network_forward.1} parent=0 // pred_check_branch
    %2248 = sbr.rel (0) target = $region53
  $region52: #{network_forward.1} parent=0 // pred_region
    _
  $region53: #{network_forward.1} parent=0 // pred_fallthru
    _

</llo_original>
